<compile_context>
chip_gen: v7x
topology: tpu7x:2x2x1
jax: 0.10.0
libtpu: 0.0.40
codegen_flags: <defaults>
</compile_context>

<pallas_src>
import jax
import jax.numpy as jnp
import numpy as np
from jax import lax
from jax.experimental import pallas as pl
from jax.experimental.pallas import tpu as pltpu

EMBED_DIM = 32
HIDDEN_DIM = 32
VOCAB_SIZE = 16
TAGSET_SIZE = 8
SEQ_LEN = 8

# Packed-parameter slab layout (all rows are 128 lanes = 4*HIDDEN_DIM wide, f32):
PACK_LANES = 4 * HIDDEN_DIM          # 128
R_GT = 0                             # rows  0:16  -> gates_table = emb @ W_ih^T   (V, 4H)
R_WHH = R_GT + VOCAB_SIZE            # rows 16:48  -> W_hh^T                       (H, 4H)
R_B = R_WHH + HIDDEN_DIM             # rows 48:56  -> b_ih + b_hh in row 48        (1, 4H)
R_WOUT = R_B + 8                     # rows 56:88  -> W_out^T in lanes 0:TAG       (H, TAG)
R_BOUT = R_WOUT + HIDDEN_DIM         # rows 88:96  -> b_out in row 88, lanes 0:TAG (1, TAG)
PACK_ROWS = R_BOUT + 8               # 96


def lstm_tagger_kernel(ids_ref, params_ref, out_ref):
    H = HIDDEN_DIM
    T = SEQ_LEN
    V = VOCAB_SIZE
    TAG = TAGSET_SIZE

    # ---------------- prologue (off the recurrence critical path) ----------------
    # Fused embedding gather + input projection: one-hot (T, V) built with a VPU
    # compare, then a single MXU matmul against the pre-folded gates_table, with the
    # combined bias added.
    onehot = (ids_ref[...] ==
              lax.broadcasted_iota(jnp.int32, (T, V), 1)).astype(jnp.float32)
    gates_x = (jnp.dot(onehot, params_ref[R_GT:R_GT + V, :],
                       preferred_element_type=jnp.float32)
               + params_ref[R_B:R_B + 1, :])                          # (T, 4H)

    whh = params_ref[R_WHH:R_WHH + H, :]                              # (H, 4H), hoisted load

    h = jnp.zeros((1, H), jnp.float32)   # PyTorch default initial hidden state
    c = jnp.zeros((1, H), jnp.float32)
    hs = []                              # h_t rows stay in vregs (no VMEM scratch)

    # ---------------- recurrence: fully unrolled, T = 8 static ----------------
    for t in range(T):
        # Only the hidden projection stays inside the serial chain.
        gates = gates_x[t:t + 1, :] + jnp.dot(h, whh,
                                              preferred_element_type=jnp.float32)  # (1, 4H)

        # Whole-vreg nonlinearities: 2 EUP launches (sigmoid + tanh) on all 128 lanes.
        sig = jax.nn.sigmoid(gates)
        th = jnp.tanh(gates)

        i_g = sig[:, 0:H]
        f_g = sig[:, H:2 * H]
        g_g = th[:, 2 * H:3 * H]
        o_g = sig[:, 3 * H:4 * H]

        c = f_g * c + i_g * g_g
        h = o_g * jnp.tanh(c)
        hs.append(h)

    hcat = jnp.concatenate(hs, axis=0)                                # (T, H), vreg-resident

    # ---------------- epilogue: one matmul + one log_softmax + one store ----------------
    wout = params_ref[R_WOUT:R_WOUT + H, 0:TAG]                       # (H, TAG)
    bout = params_ref[R_BOUT:R_BOUT + 1, 0:TAG]                       # (1, TAG)
    tag = jnp.dot(hcat, wout, preferred_element_type=jnp.float32) + bout
    m = jnp.max(tag, axis=1, keepdims=True)
    lse = jnp.log(jnp.sum(jnp.exp(tag - m), axis=1, keepdims=True))
    out_ref[...] = tag - m - lse


def pack_params(params):
    """One-time weight prep: fold embedding into the input projection and pack all
    parameters into a single 128-lane-wide f32 slab (PACK_ROWS, 128)."""
    emb_table, w_ih, w_hh, b_ih, b_hh, w_out, b_out = params
    f32 = jnp.float32

    gates_table = jnp.dot(emb_table.astype(f32), w_ih.T.astype(f32),
                          precision=lax.Precision.HIGHEST)            # (V, 4H)
    whh_t = w_hh.T.astype(f32)                                        # (H, 4H)
    b = (b_ih + b_hh).astype(f32).reshape(1, 4 * HIDDEN_DIM)          # (1, 4H)
    wout_t = w_out.T.astype(f32)                                      # (H, TAG)
    bout = b_out.astype(f32).reshape(1, TAGSET_SIZE)                  # (1, TAG)

    def pad_block(x, rows):
        return jnp.pad(x, ((0, rows - x.shape[0]), (0, PACK_LANES - x.shape[1])))

    slab = jnp.concatenate([
        pad_block(gates_table, VOCAB_SIZE),      # rows  0:16
        pad_block(whh_t, HIDDEN_DIM),            # rows 16:48
        pad_block(b, 8),                         # rows 48:56
        pad_block(wout_t, HIDDEN_DIM),           # rows 56:88
        pad_block(bout, 8),                      # rows 88:96
    ], axis=0)
    assert slab.shape == (PACK_ROWS, PACK_LANES)
    return slab


def lstm_tagger_forward(sentences, packed_params):
    """sentences: (B, SEQ_LEN) or (SEQ_LEN,) int token ids.
    Returns (B, SEQ_LEN, TAGSET) or (SEQ_LEN, TAGSET) f32 log-probabilities."""
    single = sentences.ndim == 1
    ids = sentences.astype(jnp.int32).reshape(-1, SEQ_LEN)
    B = ids.shape[0]
    ids = ids.reshape(B, SEQ_LEN, 1)

    out = pl.pallas_call(
        lstm_tagger_kernel,
        out_shape=jax.ShapeDtypeStruct((B, SEQ_LEN, TAGSET_SIZE), jnp.float32),
        grid_spec=pltpu.PrefetchScalarGridSpec(
            num_scalar_prefetch=0,
            grid=(B,),
            in_specs=[
                # per-sentence ids tile (batch dim squeezed away in the kernel)
                pl.BlockSpec((None, SEQ_LEN, 1), lambda b: (b, 0, 0)),
                # packed weights: constant block index -> stays resident in VMEM
                pl.BlockSpec((PACK_ROWS, PACK_LANES), lambda b: (0, 0)),
            ],
            out_specs=pl.BlockSpec((None, SEQ_LEN, TAGSET_SIZE), lambda b: (b, 0, 0)),
        ),
        compiler_params=pltpu.CompilerParams(dimension_semantics=("parallel",)),
    )(ids, packed_params)
    return out[0] if single else out


def lstm_tagger_reference(sentence, params):
    """Pure-JAX reference reproducing the PyTorch forward semantics (one sentence)."""
    emb_table, w_ih, w_hh, b_ih, b_hh, w_out, b_out = params
    embeds = emb_table[sentence]
    H = HIDDEN_DIM

    def step(carry, x_t):
        h, c = carry
        gates = x_t @ w_ih.T + b_ih + h @ w_hh.T + b_hh
        i_g = jax.nn.sigmoid(gates[0:H])
        f_g = jax.nn.sigmoid(gates[H:2 * H])
        g_g = jnp.tanh(gates[2 * H:3 * H])
        o_g = jax.nn.sigmoid(gates[3 * H:4 * H])
        c_new = f_g * c + i_g * g_g
        h_new = o_g * jnp.tanh(c_new)
        return (h_new, c_new), h_new

    init = (jnp.zeros((H,), jnp.float32), jnp.zeros((H,), jnp.float32))
    _, lstm_out = jax.lax.scan(step, init, embeds)                    # (T, H)
    tag_space = lstm_out @ w_out.T + b_out                            # (T, TAGSET)
    return jax.nn.log_softmax(tag_space, axis=1)


def init_params(key):
    ks = jax.random.split(key, 7)
    scale = 0.1
    emb_table = jax.random.uniform(ks[0], (VOCAB_SIZE, EMBED_DIM), jnp.float32, -scale, scale)
    w_ih = jax.random.uniform(ks[1], (4 * HIDDEN_DIM, EMBED_DIM), jnp.float32, -scale, scale)
    w_hh = jax.random.uniform(ks[2], (4 * HIDDEN_DIM, HIDDEN_DIM), jnp.float32, -scale, scale)
    b_ih = jax.random.uniform(ks[3], (4 * HIDDEN_DIM,), jnp.float32, -scale, scale)
    b_hh = jax.random.uniform(ks[4], (4 * HIDDEN_DIM,), jnp.float32, -scale, scale)
    w_out = jax.random.uniform(ks[5], (TAGSET_SIZE, HIDDEN_DIM), jnp.float32, -scale, scale)
    b_out = jax.random.uniform(ks[6], (TAGSET_SIZE,), jnp.float32, -scale, scale)
    return (emb_table, w_ih, w_hh, b_ih, b_hh, w_out, b_out)


if __name__ == "__main__":
    key = jax.random.PRNGKey(0)
    pkey, skey = jax.random.split(key)
    params = init_params(pkey)

    # One-time weight prep (outside the per-call forward path).
    packed = jax.block_until_ready(pack_params(params))

    # Batched forward: B sentences per pallas_call, grid=(B,) parallel.
    B = 4
    sentences = jax.random.randint(skey, (B, SEQ_LEN), 0, VOCAB_SIZE, dtype=jnp.int32)

    tag_scores = jax.block_until_ready(lstm_tagger_forward(sentences, packed))
    ref = jax.block_until_ready(
        jax.vmap(lambda s: lstm_tagger_reference(s, params))(sentences))

    assert tag_scores.shape == (B, SEQ_LEN, TAGSET_SIZE)
    np.testing.assert_allclose(np.asarray(tag_scores), np.asarray(ref),
                               rtol=1e-5, atol=1e-5)

    # Single-sentence path (matches the PyTorch forward signature / output shape).
    one = jax.block_until_ready(lstm_tagger_forward(sentences[0], packed))
    assert one.shape == (SEQ_LEN, TAGSET_SIZE)
    np.testing.assert_allclose(np.asarray(one), np.asarray(ref[0]),
                               rtol=1e-5, atol=1e-5)

    print("KERNEL_OK")
</pallas_src>

<mosaic_0001>
module attributes {stable_mosaic.version = 11 : i64} {
  func.func @lstm_tagger_kernel(%arg0: i32, %arg1: memref<1x8x1xi32, #tpu.memory_space<vmem>>, %arg2: memref<96x128xf32, #tpu.memory_space<vmem>>, %arg3: memref<1x8x8xf32, #tpu.memory_space<vmem>>) attributes {dimension_semantics = [#tpu.dimension_semantics<parallel>], iteration_bounds = array<i64: 4>, scalar_prefetch = 0 : i64, scratch_operands = 0 : i64, tpu.core_type = #tpu.core_type<tc>, window_params = [{transform_indices = @transform_0, window_bounds = array<i64: 1, 8, 1>}, {pipeline_mode = #tpu.pipeline_mode<synchronous>, transform_indices = @transform_1, window_bounds = array<i64: 96, 128>}, {transform_indices = @transform_2, window_bounds = array<i64: 1, 8, 8>}]} {
    %c0 = arith.constant 0 : index
    %c0_0 = arith.constant 0 : index
    %c0_1 = arith.constant 0 : index
    %0 = vector.load %arg1[%c0, %c0_0, %c0_1] : memref<1x8x1xi32, #tpu.memory_space<vmem>>, vector<1x8x1xi32>
    %1 = vector.shape_cast %0 : vector<1x8x1xi32> to vector<8x1xi32>
    %2 = tpu.iota {dimensions = array<i32: 1>} : vector<8x16xi32>
    %3 = vector.broadcast %1 : vector<8x1xi32> to vector<8x16xi32>
    %4 = arith.cmpi eq, %3, %2 : vector<8x16xi32>
    %5 = arith.extui %4 : vector<8x16xi1> to vector<8x16xi32>
    %6 = arith.sitofp %5 : vector<8x16xi32> to vector<8x16xf32>
    %c0_2 = arith.constant 0 : index
    %c0_3 = arith.constant 0 : index
    %7 = vector.load %arg2[%c0_2, %c0_3] : memref<96x128xf32, #tpu.memory_space<vmem>>, vector<16x128xf32>
    %cst = arith.constant dense<0.000000e+00> : vector<8x128xf32>
    %8 = tpu.matmul %6, %7, %cst {dimension_numbers = #tpu.dot_dimension_numbers<[1], [0], [0], [1], [0, 0, 1, 1], [], []>} : vector<8x16xf32>, vector<16x128xf32>, vector<8x128xf32> -> vector<8x128xf32>
    %c48 = arith.constant 48 : index
    %c0_4 = arith.constant 0 : index
    %9 = vector.load %arg2[%c48, %c0_4] : memref<96x128xf32, #tpu.memory_space<vmem>>, vector<1x128xf32>
    %10 = vector.broadcast %9 : vector<1x128xf32> to vector<8x128xf32>
    %11 = arith.addf %8, %10 : vector<8x128xf32>
    %c16 = arith.constant 16 : index
    %c0_5 = arith.constant 0 : index
    %12 = vector.load %arg2[%c16, %c0_5] : memref<96x128xf32, #tpu.memory_space<vmem>>, vector<32x128xf32>
    %cst_6 = arith.constant 0.000000e+00 : f32
    %13 = vector.broadcast %cst_6 : f32 to vector<1x32xf32>
    %cst_7 = arith.constant 0.000000e+00 : f32
    %14 = vector.broadcast %cst_7 : f32 to vector<1x32xf32>
    %15 = vector.extract_strided_slice %11 {offsets = [0, 0], sizes = [1, 128], strides = [1, 1]} : vector<8x128xf32> to vector<1x128xf32>
    %cst_8 = arith.constant dense<0.000000e+00> : vector<1x128xf32>
    %16 = tpu.matmul %13, %12, %cst_8 {dimension_numbers = #tpu.dot_dimension_numbers<[1], [0], [0], [1], [0, 0, 1, 1], [], []>} : vector<1x32xf32>, vector<32x128xf32>, vector<1x128xf32> -> vector<1x128xf32>
    %17 = arith.addf %15, %16 : vector<1x128xf32>
    %18 = arith.negf %17 : vector<1x128xf32>
    %19 = math.exp %18 : vector<1x128xf32>
    %cst_9 = arith.constant 1.000000e+00 : f32
    %20 = vector.broadcast %cst_9 : f32 to vector<1x128xf32>
    %21 = arith.addf %20, %19 : vector<1x128xf32>
    %22 = arith.divf %20, %21 : vector<1x128xf32>
    %23 = math.tanh %17 : vector<1x128xf32>
    %24 = vector.extract_strided_slice %22 {offsets = [0, 0], sizes = [1, 32], strides = [1, 1]} : vector<1x128xf32> to vector<1x32xf32>
    %25 = vector.extract_strided_slice %22 {offsets = [0, 32], sizes = [1, 32], strides = [1, 1]} : vector<1x128xf32> to vector<1x32xf32>
    %26 = vector.extract_strided_slice %23 {offsets = [0, 64], sizes = [1, 32], strides = [1, 1]} : vector<1x128xf32> to vector<1x32xf32>
    %27 = vector.extract_strided_slice %22 {offsets = [0, 96], sizes = [1, 32], strides = [1, 1]} : vector<1x128xf32> to vector<1x32xf32>
    %28 = arith.mulf %25, %14 : vector<1x32xf32>
    %29 = arith.mulf %24, %26 : vector<1x32xf32>
    %30 = arith.addf %28, %29 : vector<1x32xf32>
    %31 = math.tanh %30 : vector<1x32xf32>
    %32 = arith.mulf %27, %31 : vector<1x32xf32>
    %33 = vector.extract_strided_slice %11 {offsets = [1, 0], sizes = [1, 128], strides = [1, 1]} : vector<8x128xf32> to vector<1x128xf32>
    %cst_10 = arith.constant dense<0.000000e+00> : vector<1x128xf32>
    %34 = tpu.matmul %32, %12, %cst_10 {dimension_numbers = #tpu.dot_dimension_numbers<[1], [0], [0], [1], [0, 0, 1, 1], [], []>} : vector<1x32xf32>, vector<32x128xf32>, vector<1x128xf32> -> vector<1x128xf32>
    %35 = arith.addf %33, %34 : vector<1x128xf32>
    %36 = arith.negf %35 : vector<1x128xf32>
    %37 = math.exp %36 : vector<1x128xf32>
    %cst_11 = arith.constant 1.000000e+00 : f32
    %38 = vector.broadcast %cst_11 : f32 to vector<1x128xf32>
    %39 = arith.addf %38, %37 : vector<1x128xf32>
    %40 = arith.divf %38, %39 : vector<1x128xf32>
    %41 = math.tanh %35 : vector<1x128xf32>
    %42 = vector.extract_strided_slice %40 {offsets = [0, 0], sizes = [1, 32], strides = [1, 1]} : vector<1x128xf32> to vector<1x32xf32>
    %43 = vector.extract_strided_slice %40 {offsets = [0, 32], sizes = [1, 32], strides = [1, 1]} : vector<1x128xf32> to vector<1x32xf32>
    %44 = vector.extract_strided_slice %41 {offsets = [0, 64], sizes = [1, 32], strides = [1, 1]} : vector<1x128xf32> to vector<1x32xf32>
    %45 = vector.extract_strided_slice %40 {offsets = [0, 96], sizes = [1, 32], strides = [1, 1]} : vector<1x128xf32> to vector<1x32xf32>
    %46 = arith.mulf %43, %30 : vector<1x32xf32>
    %47 = arith.mulf %42, %44 : vector<1x32xf32>
    %48 = arith.addf %46, %47 : vector<1x32xf32>
    %49 = math.tanh %48 : vector<1x32xf32>
    %50 = arith.mulf %45, %49 : vector<1x32xf32>
    %51 = vector.extract_strided_slice %11 {offsets = [2, 0], sizes = [1, 128], strides = [1, 1]} : vector<8x128xf32> to vector<1x128xf32>
    %cst_12 = arith.constant dense<0.000000e+00> : vector<1x128xf32>
    %52 = tpu.matmul %50, %12, %cst_12 {dimension_numbers = #tpu.dot_dimension_numbers<[1], [0], [0], [1], [0, 0, 1, 1], [], []>} : vector<1x32xf32>, vector<32x128xf32>, vector<1x128xf32> -> vector<1x128xf32>
    %53 = arith.addf %51, %52 : vector<1x128xf32>
    %54 = arith.negf %53 : vector<1x128xf32>
    %55 = math.exp %54 : vector<1x128xf32>
    %cst_13 = arith.constant 1.000000e+00 : f32
    %56 = vector.broadcast %cst_13 : f32 to vector<1x128xf32>
    %57 = arith.addf %56, %55 : vector<1x128xf32>
    %58 = arith.divf %56, %57 : vector<1x128xf32>
    %59 = math.tanh %53 : vector<1x128xf32>
    %60 = vector.extract_strided_slice %58 {offsets = [0, 0], sizes = [1, 32], strides = [1, 1]} : vector<1x128xf32> to vector<1x32xf32>
    %61 = vector.extract_strided_slice %58 {offsets = [0, 32], sizes = [1, 32], strides = [1, 1]} : vector<1x128xf32> to vector<1x32xf32>
    %62 = vector.extract_strided_slice %59 {offsets = [0, 64], sizes = [1, 32], strides = [1, 1]} : vector<1x128xf32> to vector<1x32xf32>
    %63 = vector.extract_strided_slice %58 {offsets = [0, 96], sizes = [1, 32], strides = [1, 1]} : vector<1x128xf32> to vector<1x32xf32>
    %64 = arith.mulf %61, %48 : vector<1x32xf32>
    %65 = arith.mulf %60, %62 : vector<1x32xf32>
    %66 = arith.addf %64, %65 : vector<1x32xf32>
    %67 = math.tanh %66 : vector<1x32xf32>
    %68 = arith.mulf %63, %67 : vector<1x32xf32>
    %69 = vector.extract_strided_slice %11 {offsets = [3, 0], sizes = [1, 128], strides = [1, 1]} : vector<8x128xf32> to vector<1x128xf32>
    %cst_14 = arith.constant dense<0.000000e+00> : vector<1x128xf32>
    %70 = tpu.matmul %68, %12, %cst_14 {dimension_numbers = #tpu.dot_dimension_numbers<[1], [0], [0], [1], [0, 0, 1, 1], [], []>} : vector<1x32xf32>, vector<32x128xf32>, vector<1x128xf32> -> vector<1x128xf32>
    %71 = arith.addf %69, %70 : vector<1x128xf32>
    %72 = arith.negf %71 : vector<1x128xf32>
    %73 = math.exp %72 : vector<1x128xf32>
    %cst_15 = arith.constant 1.000000e+00 : f32
    %74 = vector.broadcast %cst_15 : f32 to vector<1x128xf32>
    %75 = arith.addf %74, %73 : vector<1x128xf32>
    %76 = arith.divf %74, %75 : vector<1x128xf32>
    %77 = math.tanh %71 : vector<1x128xf32>
    %78 = vector.extract_strided_slice %76 {offsets = [0, 0], sizes = [1, 32], strides = [1, 1]} : vector<1x128xf32> to vector<1x32xf32>
    %79 = vector.extract_strided_slice %76 {offsets = [0, 32], sizes = [1, 32], strides = [1, 1]} : vector<1x128xf32> to vector<1x32xf32>
    %80 = vector.extract_strided_slice %77 {offsets = [0, 64], sizes = [1, 32], strides = [1, 1]} : vector<1x128xf32> to vector<1x32xf32>
    %81 = vector.extract_strided_slice %76 {offsets = [0, 96], sizes = [1, 32], strides = [1, 1]} : vector<1x128xf32> to vector<1x32xf32>
    %82 = arith.mulf %79, %66 : vector<1x32xf32>
    %83 = arith.mulf %78, %80 : vector<1x32xf32>
    %84 = arith.addf %82, %83 : vector<1x32xf32>
    %85 = math.tanh %84 : vector<1x32xf32>
    %86 = arith.mulf %81, %85 : vector<1x32xf32>
    %87 = vector.extract_strided_slice %11 {offsets = [4, 0], sizes = [1, 128], strides = [1, 1]} : vector<8x128xf32> to vector<1x128xf32>
    %cst_16 = arith.constant dense<0.000000e+00> : vector<1x128xf32>
    %88 = tpu.matmul %86, %12, %cst_16 {dimension_numbers = #tpu.dot_dimension_numbers<[1], [0], [0], [1], [0, 0, 1, 1], [], []>} : vector<1x32xf32>, vector<32x128xf32>, vector<1x128xf32> -> vector<1x128xf32>
    %89 = arith.addf %87, %88 : vector<1x128xf32>
    %90 = arith.negf %89 : vector<1x128xf32>
    %91 = math.exp %90 : vector<1x128xf32>
    %cst_17 = arith.constant 1.000000e+00 : f32
    %92 = vector.broadcast %cst_17 : f32 to vector<1x128xf32>
    %93 = arith.addf %92, %91 : vector<1x128xf32>
    %94 = arith.divf %92, %93 : vector<1x128xf32>
    %95 = math.tanh %89 : vector<1x128xf32>
    %96 = vector.extract_strided_slice %94 {offsets = [0, 0], sizes = [1, 32], strides = [1, 1]} : vector<1x128xf32> to vector<1x32xf32>
    %97 = vector.extract_strided_slice %94 {offsets = [0, 32], sizes = [1, 32], strides = [1, 1]} : vector<1x128xf32> to vector<1x32xf32>
    %98 = vector.extract_strided_slice %95 {offsets = [0, 64], sizes = [1, 32], strides = [1, 1]} : vector<1x128xf32> to vector<1x32xf32>
    %99 = vector.extract_strided_slice %94 {offsets = [0, 96], sizes = [1, 32], strides = [1, 1]} : vector<1x128xf32> to vector<1x32xf32>
    %100 = arith.mulf %97, %84 : vector<1x32xf32>
    %101 = arith.mulf %96, %98 : vector<1x32xf32>
    %102 = arith.addf %100, %101 : vector<1x32xf32>
    %103 = math.tanh %102 : vector<1x32xf32>
    %104 = arith.mulf %99, %103 : vector<1x32xf32>
    %105 = vector.extract_strided_slice %11 {offsets = [5, 0], sizes = [1, 128], strides = [1, 1]} : vector<8x128xf32> to vector<1x128xf32>
    %cst_18 = arith.constant dense<0.000000e+00> : vector<1x128xf32>
    %106 = tpu.matmul %104, %12, %cst_18 {dimension_numbers = #tpu.dot_dimension_numbers<[1], [0], [0], [1], [0, 0, 1, 1], [], []>} : vector<1x32xf32>, vector<32x128xf32>, vector<1x128xf32> -> vector<1x128xf32>
    %107 = arith.addf %105, %106 : vector<1x128xf32>
    %108 = arith.negf %107 : vector<1x128xf32>
    %109 = math.exp %108 : vector<1x128xf32>
    %cst_19 = arith.constant 1.000000e+00 : f32
    %110 = vector.broadcast %cst_19 : f32 to vector<1x128xf32>
    %111 = arith.addf %110, %109 : vector<1x128xf32>
    %112 = arith.divf %110, %111 : vector<1x128xf32>
    %113 = math.tanh %107 : vector<1x128xf32>
    %114 = vector.extract_strided_slice %112 {offsets = [0, 0], sizes = [1, 32], strides = [1, 1]} : vector<1x128xf32> to vector<1x32xf32>
    %115 = vector.extract_strided_slice %112 {offsets = [0, 32], sizes = [1, 32], strides = [1, 1]} : vector<1x128xf32> to vector<1x32xf32>
    %116 = vector.extract_strided_slice %113 {offsets = [0, 64], sizes = [1, 32], strides = [1, 1]} : vector<1x128xf32> to vector<1x32xf32>
    %117 = vector.extract_strided_slice %112 {offsets = [0, 96], sizes = [1, 32], strides = [1, 1]} : vector<1x128xf32> to vector<1x32xf32>
    %118 = arith.mulf %115, %102 : vector<1x32xf32>
    %119 = arith.mulf %114, %116 : vector<1x32xf32>
    %120 = arith.addf %118, %119 : vector<1x32xf32>
    %121 = math.tanh %120 : vector<1x32xf32>
    %122 = arith.mulf %117, %121 : vector<1x32xf32>
    %123 = vector.extract_strided_slice %11 {offsets = [6, 0], sizes = [1, 128], strides = [1, 1]} : vector<8x128xf32> to vector<1x128xf32>
    %cst_20 = arith.constant dense<0.000000e+00> : vector<1x128xf32>
    %124 = tpu.matmul %122, %12, %cst_20 {dimension_numbers = #tpu.dot_dimension_numbers<[1], [0], [0], [1], [0, 0, 1, 1], [], []>} : vector<1x32xf32>, vector<32x128xf32>, vector<1x128xf32> -> vector<1x128xf32>
    %125 = arith.addf %123, %124 : vector<1x128xf32>
    %126 = arith.negf %125 : vector<1x128xf32>
    %127 = math.exp %126 : vector<1x128xf32>
    %cst_21 = arith.constant 1.000000e+00 : f32
    %128 = vector.broadcast %cst_21 : f32 to vector<1x128xf32>
    %129 = arith.addf %128, %127 : vector<1x128xf32>
    %130 = arith.divf %128, %129 : vector<1x128xf32>
    %131 = math.tanh %125 : vector<1x128xf32>
    %132 = vector.extract_strided_slice %130 {offsets = [0, 0], sizes = [1, 32], strides = [1, 1]} : vector<1x128xf32> to vector<1x32xf32>
    %133 = vector.extract_strided_slice %130 {offsets = [0, 32], sizes = [1, 32], strides = [1, 1]} : vector<1x128xf32> to vector<1x32xf32>
    %134 = vector.extract_strided_slice %131 {offsets = [0, 64], sizes = [1, 32], strides = [1, 1]} : vector<1x128xf32> to vector<1x32xf32>
    %135 = vector.extract_strided_slice %130 {offsets = [0, 96], sizes = [1, 32], strides = [1, 1]} : vector<1x128xf32> to vector<1x32xf32>
    %136 = arith.mulf %133, %120 : vector<1x32xf32>
    %137 = arith.mulf %132, %134 : vector<1x32xf32>
    %138 = arith.addf %136, %137 : vector<1x32xf32>
    %139 = math.tanh %138 : vector<1x32xf32>
    %140 = arith.mulf %135, %139 : vector<1x32xf32>
    %141 = vector.extract_strided_slice %11 {offsets = [7, 0], sizes = [1, 128], strides = [1, 1]} : vector<8x128xf32> to vector<1x128xf32>
    %cst_22 = arith.constant dense<0.000000e+00> : vector<1x128xf32>
    %142 = tpu.matmul %140, %12, %cst_22 {dimension_numbers = #tpu.dot_dimension_numbers<[1], [0], [0], [1], [0, 0, 1, 1], [], []>} : vector<1x32xf32>, vector<32x128xf32>, vector<1x128xf32> -> vector<1x128xf32>
    %143 = arith.addf %141, %142 : vector<1x128xf32>
    %144 = arith.negf %143 : vector<1x128xf32>
    %145 = math.exp %144 : vector<1x128xf32>
    %cst_23 = arith.constant 1.000000e+00 : f32
    %146 = vector.broadcast %cst_23 : f32 to vector<1x128xf32>
    %147 = arith.addf %146, %145 : vector<1x128xf32>
    %148 = arith.divf %146, %147 : vector<1x128xf32>
    %149 = math.tanh %143 : vector<1x128xf32>
    %150 = vector.extract_strided_slice %148 {offsets = [0, 0], sizes = [1, 32], strides = [1, 1]} : vector<1x128xf32> to vector<1x32xf32>
    %151 = vector.extract_strided_slice %148 {offsets = [0, 32], sizes = [1, 32], strides = [1, 1]} : vector<1x128xf32> to vector<1x32xf32>
    %152 = vector.extract_strided_slice %149 {offsets = [0, 64], sizes = [1, 32], strides = [1, 1]} : vector<1x128xf32> to vector<1x32xf32>
    %153 = vector.extract_strided_slice %148 {offsets = [0, 96], sizes = [1, 32], strides = [1, 1]} : vector<1x128xf32> to vector<1x32xf32>
    %154 = arith.mulf %151, %138 : vector<1x32xf32>
    %155 = arith.mulf %150, %152 : vector<1x32xf32>
    %156 = arith.addf %154, %155 : vector<1x32xf32>
    %157 = math.tanh %156 : vector<1x32xf32>
    %158 = arith.mulf %153, %157 : vector<1x32xf32>
    %159 = tpu.concatenate %32, %50, %68, %86, %104, %122, %140, %158 in 0 : vector<1x32xf32>, vector<1x32xf32>, vector<1x32xf32>, vector<1x32xf32>, vector<1x32xf32>, vector<1x32xf32>, vector<1x32xf32>, vector<1x32xf32> -> vector<8x32xf32>
    %c56 = arith.constant 56 : index
    %c0_24 = arith.constant 0 : index
    %160 = vector.load %arg2[%c56, %c0_24] : memref<96x128xf32, #tpu.memory_space<vmem>>, vector<32x8xf32>
    %c88 = arith.constant 88 : index
    %c0_25 = arith.constant 0 : index
    %161 = vector.load %arg2[%c88, %c0_25] : memref<96x128xf32, #tpu.memory_space<vmem>>, vector<1x8xf32>
    %cst_26 = arith.constant dense<0.000000e+00> : vector<8x8xf32>
    %162 = tpu.matmul %159, %160, %cst_26 {dimension_numbers = #tpu.dot_dimension_numbers<[1], [0], [0], [1], [0, 0, 1, 1], [], []>} : vector<8x32xf32>, vector<32x8xf32>, vector<8x8xf32> -> vector<8x8xf32>
    %163 = vector.broadcast %161 : vector<1x8xf32> to vector<8x8xf32>
    %164 = arith.addf %162, %163 : vector<8x8xf32>
    %cst_27 = arith.constant dense<0xFF800000> : vector<8xf32>
    %165 = vector.multi_reduction <maximumf>, %164, %cst_27 [1] : vector<8x8xf32> to vector<8xf32>
    %166 = vector.shape_cast %165 : vector<8xf32> to vector<8x1xf32>
    %167 = vector.broadcast %166 : vector<8x1xf32> to vector<8x8xf32>
    %168 = arith.subf %164, %167 : vector<8x8xf32>
    %169 = math.exp %168 : vector<8x8xf32>
    %cst_28 = arith.constant dense<0.000000e+00> : vector<8xf32>
    %170 = vector.multi_reduction <add>, %169, %cst_28 [1] : vector<8x8xf32> to vector<8xf32>
    %171 = vector.shape_cast %170 : vector<8xf32> to vector<8x1xf32>
    %172 = math.log %171 : vector<8x1xf32>
    %173 = vector.broadcast %166 : vector<8x1xf32> to vector<8x8xf32>
    %174 = arith.subf %164, %173 : vector<8x8xf32>
    %175 = vector.broadcast %172 : vector<8x1xf32> to vector<8x8xf32>
    %176 = arith.subf %174, %175 : vector<8x8xf32>
    %c0_29 = arith.constant 0 : index
    %c0_30 = arith.constant 0 : index
    %c0_31 = arith.constant 0 : index
    %177 = vector.load %arg3[%c0_29, %c0_30, %c0_31] : memref<1x8x8xf32, #tpu.memory_space<vmem>>, vector<1x8x8xf32>
    %178 = vector.shape_cast %177 : vector<1x8x8xf32> to vector<8x8xf32>
    %179 = vector.shape_cast %176 : vector<8x8xf32> to vector<1x8x8xf32>
    tpu.vector_store %arg3[%c0_29, %c0_30, %c0_31], %179 {strides = array<i32>} : memref<1x8x8xf32, #tpu.memory_space<vmem>>, vector<1x8x8xf32>,
    return
  }
  func.func @transform_0(%arg0: i32) -> (i32, i32, i32) {
    %c0_i32 = arith.constant 0 : i32
    %c0_i32_0 = arith.constant 0 : i32
    %c0_i32_1 = arith.constant 0 : i32
    return %arg0, %c0_i32, %c0_i32_0 : i32, i32, i32
  }
  func.func @transform_1(%arg0: i32) -> (i32, i32) {
    %c0_i32 = arith.constant 0 : i32
    %c0_i32_0 = arith.constant 0 : i32
    %c0_i32_1 = arith.constant 0 : i32
    return %c0_i32, %c0_i32_0 : i32, i32
  }
  func.func @transform_2(%arg0: i32) -> (i32, i32, i32) {
    %c0_i32 = arith.constant 0 : i32
    %c0_i32_0 = arith.constant 0 : i32
    %c0_i32_1 = arith.constant 0 : i32
    return %arg0, %c0_i32, %c0_i32_0 : i32, i32, i32
  }
}

</mosaic_0001>

<llo_original>
// kernel: tpu_custom_call.1
$region0: #{tpu_custom_call.1}
  #allocation0 [shape = 'u32[]', space=smem, size = 0x4, offset = 0x4, fixed_abs, tag = 'smem constant byte address 0x4 - core index']
  #allocation1 [shape = 'u32[144,128]{1,0:T(1,128)}', space=vmem, size = 0x12000, scoped, tag = 'internal scratch']
  %s0 = inlined_call_operand.vmem [shape: s32[4,8,1], index: 0, kind: input, shape index: {}]
  %s1 = inlined_call_operand.hbm [shape: f32[96,128], index: 1, kind: input, shape index: {}]
  %s2 = inlined_call_operand.hbm [shape: f32[4,8,8], index: 2, kind: output, shape index: {}]
  %s3 = sld [smem:[#allocation0]]
  $region45: #{tpu_custom_call.1} parent=0
    _
  %s5 = ssub.s32 1, %s3
  %s6 = scalar_select 0, %s5, %s3
  $region1: #{tpu_custom_call.1} parent=0
    #allocation2 [shape = 'u8[49152]{0}', space=vmem, size = 0xc000, scoped, tag = 'input window, operand 1, single buffered']
    #allocation3 [shape = 's32[2]{0}', space=sflag, size = 0x8, scoped, tag = 'scoped memory for tpu_custom_call.1']
    #allocation4 [shape = 's32[2]{0}', space=sflag, size = 0x8, scoped, tag = 'scoped memory for tpu_custom_call.1']
    #allocation5 [shape = 'u8[8192]{0}', space=vmem, size = 0x2000, scoped, tag = 'output window, operand 0']
    %7 = vsyncpa [#allocation3], 0
    %8 = vsyncpa [#allocation4], 0
    %s9 = scalar_lea.sflag [#allocation4], 1
    %10 = vsyncpa %s9, 0
    loop: start=0, step=1, limit=6
    $region2: #{tpu_custom_call.1} parent=1 // loop_pre_header
      _
    $region3: #{tpu_custom_call.1} parent=1 // loop_header
      %s12 = sphi 0, %s16
      %p13 = scmp.ge.s32.totalorder %s12, 6
      %s22 = sphi 0, %s24
      %s25 = sphi 0, %s22
      %s26 = sphi 0, %s25
      %s42 = sphi 0, %s26
      %s46 = sphi 0, %s46
      %s48 = sphi 0, %s46
      %s49 = sphi 0, %s48
      %s63 = sphi 0, %s49
      %s69 = sphi 0, %s71
      %s72 = sphi 0, %s69
      %s73 = sphi 0, %s72
      %s89 = sphi 0, %s73
    $region4: #{tpu_custom_call.1} parent=1 // loop_header_branch
      %15 = sbr.rel (%p13) target = $region8
    $region5: #{tpu_custom_call.1} parent=1 // loop_body
      %s17 = ssub.s32 %s12, 1
      %s18 = ssub.s32 %s12, 2
      %s19 = sadd.s32 %s12, 1
      %s20 = ssub.s32 %s12, %s19
      %p21 = scmp.eq.s32.totalorder %s20, 0
      %s23 = sadd.s32 %s22, 1
      %s24 = scalar_select %p21, %s22, %s23
      %p27 = pneg %p21
      %p28 = scmp.eq.s32.totalorder %s12, 3
      %p29 = por %p27, %p28
      %p30 = scmp.ne.s32.totalorder %s22, %s25
      %p31 = scmp.eq.s32.totalorder %s12, 0
      %p32 = por %p30, %p31
      %p33 = scmp.ne.s32.totalorder %s22, %s25
      %p34 = scmp.eq.s32.totalorder %s17, 3
      %p35 = por %p33, %p34
      %p36 = scmp.ne.s32.totalorder %s25, %s26
      %p37 = scmp.eq.s32.totalorder %s17, 0
      %p38 = por %p36, %p37
      %p39 = scmp.ne.s32.totalorder %s25, %s26
      %p40 = scmp.eq.s32.totalorder %s18, 3
      %p41 = por %p39, %p40
      %p43 = scmp.ne.s32.totalorder %s26, %s42
      %p44 = scmp.eq.s32.totalorder %s18, 0
      %p45 = por %p43, %p44
      %s47 = sadd.s32 %s46, 1
      %p50 = scmp.eq.s32.totalorder %s12, 3
      %p51 = scmp.ne.s32.totalorder %s46, %s48
      %p52 = scmp.eq.s32.totalorder %s12, 0
      %p53 = por %p51, %p52
      %p54 = scmp.ne.s32.totalorder %s46, %s48
      %p55 = scmp.eq.s32.totalorder %s17, 3
      %p56 = por %p54, %p55
      %p57 = scmp.ne.s32.totalorder %s48, %s49
      %p58 = scmp.eq.s32.totalorder %s17, 0
      %p59 = por %p57, %p58
      %p60 = scmp.ne.s32.totalorder %s48, %s49
      %p61 = scmp.eq.s32.totalorder %s18, 3
      %p62 = por %p60, %p61
      %p64 = scmp.ne.s32.totalorder %s49, %s63
      %p65 = scmp.eq.s32.totalorder %s18, 0
      %p66 = por %p64, %p65
      %s67 = ssub.s32 %s12, %s19
      %p68 = scmp.eq.s32.totalorder %s67, 0
      %s70 = sadd.s32 %s69, 1
      %s71 = scalar_select %p68, %s69, %s70
      %p74 = pneg %p68
      %p75 = scmp.eq.s32.totalorder %s12, 3
      %p76 = por %p74, %p75
      %p77 = scmp.ne.s32.totalorder %s69, %s72
      %p78 = scmp.eq.s32.totalorder %s12, 0
      %p79 = por %p77, %p78
      %p80 = scmp.ne.s32.totalorder %s69, %s72
      %p81 = scmp.eq.s32.totalorder %s17, 3
      %p82 = por %p80, %p81
      %p83 = scmp.ne.s32.totalorder %s72, %s73
      %p84 = scmp.eq.s32.totalorder %s17, 0
      %p85 = por %p83, %p84
      %p86 = scmp.ne.s32.totalorder %s72, %s73
      %p87 = scmp.eq.s32.totalorder %s18, 3
      %p88 = por %p86, %p87
      %p90 = scmp.ne.s32.totalorder %s73, %s89
      %p91 = scmp.eq.s32.totalorder %s18, 0
      %p92 = por %p90, %p91
      %p93 = scmp.le.s32.totalorder 1, %s12
      %p94 = scmp.lt.s32.totalorder %s12, 5
      %p95 = pnand %p93, %p94
      %p96 = pneg %p95
      // Predicated region
      $region9: #{tpu_custom_call.1} parent=5 // pred_check
        _
      $region10: #{tpu_custom_call.1} parent=5 // pred_check_branch
        %98 = sbr.rel (%p95) target = $region12
      $region11: #{tpu_custom_call.1} parent=5 // pred_region
        %s99 = ssub.s32 %s12, 1
        // Predicated region
        $region13: #{tpu_custom_call.1} parent=11 // pred_check
          %p100 = pneg %p59
        $region14: #{tpu_custom_call.1} parent=11 // pred_check_branch
          %102 = sbr.rel (%p100) target = $region16
        $region15: #{tpu_custom_call.1} parent=11 // pred_region
          %s104 = ssub.s32 1536, 1536
          %105 = vsyncadd [#allocation3], %s104
          %s106 = sshll.u32 [#allocation2], 4
          %s107 = int_to_ptr.vmem [resolvable:$true] %s106
          %112 = dma.hbm_to_vmem [thread:$0]  %s1, 1536, %s107, [#allocation3], 128, 128, 8
        $region16: #{tpu_custom_call.1} parent=11 // pred_fallthru
          _
      $region12: #{tpu_custom_call.1} parent=5 // pred_fallthru
        _
      %p113 = scmp.lt.s32.totalorder %s12, 4
      // Predicated region
      $region17: #{tpu_custom_call.1} parent=5 // pred_check
        %p114 = pneg %p113
      $region18: #{tpu_custom_call.1} parent=5 // pred_check_branch
        %116 = sbr.rel (%p114) target = $region20
      $region19: #{tpu_custom_call.1} parent=5 // pred_region
        // Predicated region
        $region21: #{tpu_custom_call.1} parent=19 // pred_check
          %p117 = pneg %p32
        $region22: #{tpu_custom_call.1} parent=19 // pred_check_branch
          %119 = sbr.rel (%p117) target = $region24
        $region23: #{tpu_custom_call.1} parent=19 // pred_region
          %p120 = scmp.lt.s32.totalorder %s12, 3
          %s121 = scalar_select %p120, %s12, 3
          %s122 = smul.addr %s121, 8
          %s123 = scalar_lea.vmem %s0, %s122
        $region24: #{tpu_custom_call.1} parent=19 // pred_fallthru
          _
      $region20: #{tpu_custom_call.1} parent=5 // pred_fallthru
        _
      %p124 = scmp.le.s32.totalorder 1, %s12
      %p125 = scmp.lt.s32.totalorder %s12, 5
      %p126 = pnand %p124, %p125
      %p127 = pneg %p126
      // Predicated region
      $region25: #{tpu_custom_call.1} parent=5 // pred_check
        _
      $region26: #{tpu_custom_call.1} parent=5 // pred_check_branch
        %129 = sbr.rel (%p126) target = $region28
      $region27: #{tpu_custom_call.1} parent=5 // pred_region
        %s130 = ssub.s32 %s12, 1
        // Predicated region
        $region29: #{tpu_custom_call.1} parent=27 // pred_check
          %p131 = pneg %p59
        $region30: #{tpu_custom_call.1} parent=27 // pred_check_branch
          %133 = sbr.rel (%p131) target = $region32
        $region31: #{tpu_custom_call.1} parent=27 // pred_region
          %134 = dma.done [#allocation3], 1536
        $region32: #{tpu_custom_call.1} parent=27 // pred_fallthru
          _
        %p135 = scmp.lt.s32.totalorder %s17, 3
        %s136 = scalar_select %p135, %s17, 3
        %s137 = smul.addr %s136, 8
        %s138 = scalar_lea.vmem %s0, %s137
        %p139 = pneg %p38
        %p140 = pneg %p35
        %p141 = pneg %p59
        %p142 = pneg %p56
        %p143 = pneg %p85
        %p144 = pneg %p82
        %s145 = sand.u32 %s72, 1
        %s146 = scalar_lea.sflag [#allocation4], %s145
        %s147 = sand.u32 %s72, 1
        %s148 = smul.addr %s147, 8
        %s149 = scalar_lea.vmem [#allocation5], %s148
        %p150 = scmp.lt.s32.totalorder %s17, 3
        %s151 = scalar_select %p150, %s17, 3
        %s152 = smul.addr %s151, 8
        %s153 = scalar_lea.vmem %s0, %s152
        %v154 = vld [vmem:[%s153] sm:$0xff]
        %v155 = vlaneseq
        %v156 = vand.u32 %v155, 127
        %157 = vset.pattern.permute.xlu0 0
        %158 = vperm.xlu0 %157, %v154
        %v159 = vpop.permute.xlu0 %158
        %vm160 = vcmp.eq.s32.totalorder %v159, %v156
        %v161 = vsel %vm160, 1, 0
        %v162 = vcvt.s32.f32 %v161
        %v163 = vld [vmem:[#allocation2] sm:$0xff]
        %v164 = vld [vmem:[#allocation2 + $0x8] sm:$0xff]
        %v165 = vld [vmem:[#allocation2 + $0x30] sm:$0x1]
        %v166 = vlaneseq
        %v167 = vshrl.u32 %v166, 7
        %v168 = vsub.s32 0, %v167
        %v169 = vrot.slane %v165, %v168
        %vm170 = vcmask 130048
        %v172 = vsel %vm170, %v162, 0
        %174 = vmatprep.subr.mxu0 0.0
        %175 = vmatpush1.msra.mxu0 %v163
        %176 = vmatprep.subr.mxu0 0.0
        %177 = vmatpush1.msra.mxu0 %v164
        %178 = vmatprep.subr.mxu0 0.0
        %179 = vmatpush1.msra.mxu0 0.0
        %180 = vmatprep.subr.mxu0 0.0
        %181 = vmatpush1.msra.mxu0 0.0
        %182 = vmatprep.subr.mxu0 0.0
        %183 = vmatpush1.msra.mxu0 0.0
        %184 = vmatprep.subr.mxu0 0.0
        %185 = vmatpush1.msra.mxu0 0.0
        %186 = vmatprep.subr.mxu0 0.0
        %187 = vmatpush1.msra.mxu0 0.0
        %188 = vmatprep.subr.mxu0 0.0
        %189 = vmatpush1.msra.mxu0 0.0
        %190 = vmatprep.subr.mxu0 0.0
        %191 = vmatpush1.msra.mxu0 0.0
        %192 = vmatprep.subr.mxu0 0.0
        %193 = vmatpush1.msra.mxu0 0.0
        %194 = vmatprep.subr.mxu0 0.0
        %195 = vmatpush1.msra.mxu0 0.0
        %196 = vmatprep.subr.mxu0 0.0
        %197 = vmatpush1.msra.mxu0 0.0
        %198 = vmatprep.subr.mxu0 0.0
        %199 = vmatpush1.msra.mxu0 0.0
        %200 = vmatprep.subr.mxu0 0.0
        %201 = vmatpush1.msra.mxu0 0.0
        %202 = vmatprep.subr.mxu0 0.0
        %203 = vmatpush1.msra.mxu0 0.0
        %204 = vmatprep.subr.mxu0 0.0
        %205 = vmatpush1.msra.mxu0 0.0
        %206 = vmatprep.subr.mxu0 0.0
        %207 = vmatpush1.msra.mxu0 0.0
        %208 = vmatprep.subr.mxu0 0.0
        %209 = vmatpush1.msra.mxu0 0.0
        %210 = vmatprep.subr.mxu0 0.0
        %211 = vmatpush1.msra.mxu0 0.0
        %212 = vmatprep.subr.mxu0 0.0
        %213 = vmatpush1.msra.mxu0 0.0
        %214 = vmatprep.subr.mxu0 0.0
        %215 = vmatpush1.msra.mxu0 0.0
        %216 = vmatprep.subr.mxu0 0.0
        %217 = vmatpush1.msra.mxu0 0.0
        %218 = vmatprep.subr.mxu0 0.0
        %219 = vmatpush1.msra.mxu0 0.0
        %220 = vmatprep.subr.mxu0 0.0
        %221 = vmatpush1.msra.mxu0 0.0
        %222 = vmatprep.subr.mxu0 0.0
        %223 = vmatpush1.msra.mxu0 0.0
        %224 = vmatprep.subr.mxu0 0.0
        %225 = vmatpush1.msra.mxu0 0.0
        %226 = vmatprep.subr.mxu0 0.0
        %227 = vmatpush1.msra.mxu0 0.0
        %228 = vmatprep.subr.mxu0 0.0
        %229 = vmatpush1.msra.mxu0 0.0
        %230 = vmatprep.subr.mxu0 0.0
        %231 = vmatpush1.msra.mxu0 0.0
        %232 = vmatprep.subr.mxu0 0.0
        %233 = vmatpush1.msra.mxu0 0.0
        %234 = vmatprep.subr.mxu0 0.0
        %235 = vmatpush1.msra.mxu0 0.0
        %236 = vmatprep.subr.mxu0 0.0
        %237 = vmatpush1.msra.mxu0 0.0
        %238 = vmatprep.mubr.f32.mxu0 0.0
        %239 = vmatmul.mubr.f32.gmra.mrb[0].mxu0 %v172
        %v240 = vpop.f32.mrb[0].mxu0
        %v241 = vadd.f32 %v169, %v240
        %v242 = vpop.f32.mrb[0].mxu0
        %243 = vdwg.mxu0
        %v244 = vld [vmem:[#allocation2 + $0x10] sm:$0xff]
        %v245 = vld [vmem:[#allocation2 + $0x18] sm:$0xff]
        %v246 = vld [vmem:[#allocation2 + $0x20] sm:$0xff]
        %v247 = vld [vmem:[#allocation2 + $0x28] sm:$0xff]
        %vm248 = vcmask 261120
        %v250 = vsel %vm248, 0.0, 0
        %252 = vmatprep.subr.mxu0 0.0
        %253 = vmatpush1.msra.mxu0 %v244
        %254 = vmatprep.subr.mxu0 0.0
        %255 = vmatpush1.msra.mxu0 %v245
        %256 = vmatprep.subr.mxu0 0.0
        %257 = vmatpush1.msra.mxu0 %v246
        %258 = vmatprep.subr.mxu0 0.0
        %259 = vmatpush1.msra.mxu0 %v247
        %260 = vmatprep.subr.mxu0 0.0
        %261 = vmatpush1.msra.mxu0 0.0
        %262 = vmatprep.subr.mxu0 0.0
        %263 = vmatpush1.msra.mxu0 0.0
        %264 = vmatprep.subr.mxu0 0.0
        %265 = vmatpush1.msra.mxu0 0.0
        %266 = vmatprep.subr.mxu0 0.0
        %267 = vmatpush1.msra.mxu0 0.0
        %268 = vmatprep.subr.mxu0 0.0
        %269 = vmatpush1.msra.mxu0 0.0
        %270 = vmatprep.subr.mxu0 0.0
        %271 = vmatpush1.msra.mxu0 0.0
        %272 = vmatprep.subr.mxu0 0.0
        %273 = vmatpush1.msra.mxu0 0.0
        %274 = vmatprep.subr.mxu0 0.0
        %275 = vmatpush1.msra.mxu0 0.0
        %276 = vmatprep.subr.mxu0 0.0
        %277 = vmatpush1.msra.mxu0 0.0
        %278 = vmatprep.subr.mxu0 0.0
        %279 = vmatpush1.msra.mxu0 0.0
        %280 = vmatprep.subr.mxu0 0.0
        %281 = vmatpush1.msra.mxu0 0.0
        %282 = vmatprep.subr.mxu0 0.0
        %283 = vmatpush1.msra.mxu0 0.0
        %284 = vmatprep.subr.mxu0 0.0
        %285 = vmatpush1.msra.mxu0 0.0
        %286 = vmatprep.subr.mxu0 0.0
        %287 = vmatpush1.msra.mxu0 0.0
        %288 = vmatprep.subr.mxu0 0.0
        %289 = vmatpush1.msra.mxu0 0.0
        %290 = vmatprep.subr.mxu0 0.0
        %291 = vmatpush1.msra.mxu0 0.0
        %292 = vmatprep.subr.mxu0 0.0
        %293 = vmatpush1.msra.mxu0 0.0
        %294 = vmatprep.subr.mxu0 0.0
        %295 = vmatpush1.msra.mxu0 0.0
        %296 = vmatprep.subr.mxu0 0.0
        %297 = vmatpush1.msra.mxu0 0.0
        %298 = vmatprep.subr.mxu0 0.0
        %299 = vmatpush1.msra.mxu0 0.0
        %300 = vmatprep.subr.mxu0 0.0
        %301 = vmatpush1.msra.mxu0 0.0
        %302 = vmatprep.subr.mxu0 0.0
        %303 = vmatpush1.msra.mxu0 0.0
        %304 = vmatprep.subr.mxu0 0.0
        %305 = vmatpush1.msra.mxu0 0.0
        %306 = vmatprep.subr.mxu0 0.0
        %307 = vmatpush1.msra.mxu0 0.0
        %308 = vmatprep.subr.mxu0 0.0
        %309 = vmatpush1.msra.mxu0 0.0
        %310 = vmatprep.subr.mxu0 0.0
        %311 = vmatpush1.msra.mxu0 0.0
        %312 = vmatprep.subr.mxu0 0.0
        %313 = vmatpush1.msra.mxu0 0.0
        %314 = vmatprep.subr.mxu0 0.0
        %315 = vmatpush1.msra.mxu0 0.0
        %316 = vmatprep.mubr.f32.mxu0 0.0
        %317 = vmatmul.mubr.f32.gmra.mrb[0].mxu0 %v250
        %v318 = vpop.f32.mrb[0].mxu0
        %v319 = vadd.f32 0.0, %v318
        %v320 = vpop.f32.mrb[0].mxu0
        %321 = vdwg.mxu0
        %v322 = vadd.f32 %v241, %v319
        %v323 = vxor.u32 %v322, 2147483648
        %v324 = vmul.f32 %v323, 1.442695
        %v325 = vpow.pop %v324
        %v326 = vadd.f32 %v325, 1.0
        %v327 = vrcp.pop %v326
        %v328 = vmul.f32 1.0, %v327
        %v329 = vtanh.pop %v322
        %v330 = vmul.f32 %v328, 0.0
        %332 = vrot.lane.b32.xlu0 %v329, 64
        %v333 = vpop.permute.xlu0 %332
        %v335 = vmul.f32 %v328, %v333
        %337 = vrot.lane.b32.xlu0 %v335, 32
        %v338 = vpop.permute.xlu0 %337
        %v340 = vadd.f32 %v330, %v338
        %v341 = vtanh.pop %v340
        %343 = vrot.lane.b32.xlu0 %v341, 64
        %v344 = vpop.permute.xlu0 %343
        %v346 = vmul.f32 %v328, %v344
        %348 = vrot.lane.b32.xlu0 %v346, 32
        %v349 = vpop.permute.xlu0 %348
        %v350 = vsel %vm248, %v349, 0
        %352 = vmatprep.subr.mxu0 0.0
        %353 = vmatpush1.msra.mxu0 %v244
        %354 = vmatprep.subr.mxu0 0.0
        %355 = vmatpush1.msra.mxu0 %v245
        %356 = vmatprep.subr.mxu0 0.0
        %357 = vmatpush1.msra.mxu0 %v246
        %358 = vmatprep.subr.mxu0 0.0
        %359 = vmatpush1.msra.mxu0 %v247
        %360 = vmatprep.subr.mxu0 0.0
        %361 = vmatpush1.msra.mxu0 0.0
        %362 = vmatprep.subr.mxu0 0.0
        %363 = vmatpush1.msra.mxu0 0.0
        %364 = vmatprep.subr.mxu0 0.0
        %365 = vmatpush1.msra.mxu0 0.0
        %366 = vmatprep.subr.mxu0 0.0
        %367 = vmatpush1.msra.mxu0 0.0
        %368 = vmatprep.subr.mxu0 0.0
        %369 = vmatpush1.msra.mxu0 0.0
        %370 = vmatprep.subr.mxu0 0.0
        %371 = vmatpush1.msra.mxu0 0.0
        %372 = vmatprep.subr.mxu0 0.0
        %373 = vmatpush1.msra.mxu0 0.0
        %374 = vmatprep.subr.mxu0 0.0
        %375 = vmatpush1.msra.mxu0 0.0
        %376 = vmatprep.subr.mxu0 0.0
        %377 = vmatpush1.msra.mxu0 0.0
        %378 = vmatprep.subr.mxu0 0.0
        %379 = vmatpush1.msra.mxu0 0.0
        %380 = vmatprep.subr.mxu0 0.0
        %381 = vmatpush1.msra.mxu0 0.0
        %382 = vmatprep.subr.mxu0 0.0
        %383 = vmatpush1.msra.mxu0 0.0
        %384 = vmatprep.subr.mxu0 0.0
        %385 = vmatpush1.msra.mxu0 0.0
        %386 = vmatprep.subr.mxu0 0.0
        %387 = vmatpush1.msra.mxu0 0.0
        %388 = vmatprep.subr.mxu0 0.0
        %389 = vmatpush1.msra.mxu0 0.0
        %390 = vmatprep.subr.mxu0 0.0
        %391 = vmatpush1.msra.mxu0 0.0
        %392 = vmatprep.subr.mxu0 0.0
        %393 = vmatpush1.msra.mxu0 0.0
        %394 = vmatprep.subr.mxu0 0.0
        %395 = vmatpush1.msra.mxu0 0.0
        %396 = vmatprep.subr.mxu0 0.0
        %397 = vmatpush1.msra.mxu0 0.0
        %398 = vmatprep.subr.mxu0 0.0
        %399 = vmatpush1.msra.mxu0 0.0
        %400 = vmatprep.subr.mxu0 0.0
        %401 = vmatpush1.msra.mxu0 0.0
        %402 = vmatprep.subr.mxu0 0.0
        %403 = vmatpush1.msra.mxu0 0.0
        %404 = vmatprep.subr.mxu0 0.0
        %405 = vmatpush1.msra.mxu0 0.0
        %406 = vmatprep.subr.mxu0 0.0
        %407 = vmatpush1.msra.mxu0 0.0
        %408 = vmatprep.subr.mxu0 0.0
        %409 = vmatpush1.msra.mxu0 0.0
        %410 = vmatprep.subr.mxu0 0.0
        %411 = vmatpush1.msra.mxu0 0.0
        %412 = vmatprep.subr.mxu0 0.0
        %413 = vmatpush1.msra.mxu0 0.0
        %414 = vmatprep.subr.mxu0 0.0
        %415 = vmatpush1.msra.mxu0 0.0
        %416 = vmatprep.mubr.f32.mxu0 0.0
        %417 = vmatmul.mubr.f32.gmra.mrb[0].mxu0 %v350
        %v418 = vpop.f32.mrb[0].mxu0
        %v419 = vadd.f32 0.0, %v418
        %v420 = vpop.f32.mrb[0].mxu0
        %421 = vdwg.mxu0
        %v423 = vrot.slane %v419, 7
        %v425 = vadd.f32 %v241, %v423
        %v426 = vxor.u32 %v425, 2147483648
        %v427 = vmul.f32 %v426, 1.442695
        %v428 = vpow.pop %v427
        %v429 = vadd.f32 %v428, 1.0
        %v430 = vrcp.pop %v429
        %v431 = vmul.f32 1.0, %v430
        %v432 = vtanh.pop %v425
        %v434 = vrot.slane %v340, 7
        %v436 = vmul.f32 %v431, %v434
        %438 = vrot.lane.b32.xlu0 %v432, 64
        %v439 = vpop.permute.xlu0 %438
        %v441 = vmul.f32 %v431, %v439
        %443 = vrot.lane.b32.xlu0 %v441, 32
        %v444 = vpop.permute.xlu0 %443
        %v446 = vadd.f32 %v436, %v444
        %v447 = vtanh.pop %v446
        %449 = vrot.lane.b32.xlu0 %v447, 64
        %v450 = vpop.permute.xlu0 %449
        %v452 = vmul.f32 %v431, %v450
        %v454 = vrot.slane %v452, 1
        %455 = vrot.lane.b32.xlu0 %v454, 32
        %v456 = vpop.permute.xlu0 %455
        %v457 = vsel %vm248, %v456, 0
        %459 = vmatprep.subr.mxu0 0.0
        %460 = vmatpush1.msra.mxu0 %v244
        %461 = vmatprep.subr.mxu0 0.0
        %462 = vmatpush1.msra.mxu0 %v245
        %463 = vmatprep.subr.mxu0 0.0
        %464 = vmatpush1.msra.mxu0 %v246
        %465 = vmatprep.subr.mxu0 0.0
        %466 = vmatpush1.msra.mxu0 %v247
        %467 = vmatprep.subr.mxu0 0.0
        %468 = vmatpush1.msra.mxu0 0.0
        %469 = vmatprep.subr.mxu0 0.0
        %470 = vmatpush1.msra.mxu0 0.0
        %471 = vmatprep.subr.mxu0 0.0
        %472 = vmatpush1.msra.mxu0 0.0
        %473 = vmatprep.subr.mxu0 0.0
        %474 = vmatpush1.msra.mxu0 0.0
        %475 = vmatprep.subr.mxu0 0.0
        %476 = vmatpush1.msra.mxu0 0.0
        %477 = vmatprep.subr.mxu0 0.0
        %478 = vmatpush1.msra.mxu0 0.0
        %479 = vmatprep.subr.mxu0 0.0
        %480 = vmatpush1.msra.mxu0 0.0
        %481 = vmatprep.subr.mxu0 0.0
        %482 = vmatpush1.msra.mxu0 0.0
        %483 = vmatprep.subr.mxu0 0.0
        %484 = vmatpush1.msra.mxu0 0.0
        %485 = vmatprep.subr.mxu0 0.0
        %486 = vmatpush1.msra.mxu0 0.0
        %487 = vmatprep.subr.mxu0 0.0
        %488 = vmatpush1.msra.mxu0 0.0
        %489 = vmatprep.subr.mxu0 0.0
        %490 = vmatpush1.msra.mxu0 0.0
        %491 = vmatprep.subr.mxu0 0.0
        %492 = vmatpush1.msra.mxu0 0.0
        %493 = vmatprep.subr.mxu0 0.0
        %494 = vmatpush1.msra.mxu0 0.0
        %495 = vmatprep.subr.mxu0 0.0
        %496 = vmatpush1.msra.mxu0 0.0
        %497 = vmatprep.subr.mxu0 0.0
        %498 = vmatpush1.msra.mxu0 0.0
        %499 = vmatprep.subr.mxu0 0.0
        %500 = vmatpush1.msra.mxu0 0.0
        %501 = vmatprep.subr.mxu0 0.0
        %502 = vmatpush1.msra.mxu0 0.0
        %503 = vmatprep.subr.mxu0 0.0
        %504 = vmatpush1.msra.mxu0 0.0
        %505 = vmatprep.subr.mxu0 0.0
        %506 = vmatpush1.msra.mxu0 0.0
        %507 = vmatprep.subr.mxu0 0.0
        %508 = vmatpush1.msra.mxu0 0.0
        %509 = vmatprep.subr.mxu0 0.0
        %510 = vmatpush1.msra.mxu0 0.0
        %511 = vmatprep.subr.mxu0 0.0
        %512 = vmatpush1.msra.mxu0 0.0
        %513 = vmatprep.subr.mxu0 0.0
        %514 = vmatpush1.msra.mxu0 0.0
        %515 = vmatprep.subr.mxu0 0.0
        %516 = vmatpush1.msra.mxu0 0.0
        %517 = vmatprep.subr.mxu0 0.0
        %518 = vmatpush1.msra.mxu0 0.0
        %519 = vmatprep.subr.mxu0 0.0
        %520 = vmatpush1.msra.mxu0 0.0
        %521 = vmatprep.subr.mxu0 0.0
        %522 = vmatpush1.msra.mxu0 0.0
        %523 = vmatprep.mubr.f32.mxu0 0.0
        %524 = vmatmul.mubr.f32.gmra.mrb[0].mxu0 %v457
        %v525 = vpop.f32.mrb[0].mxu0
        %v526 = vadd.f32 0.0, %v525
        %v527 = vpop.f32.mrb[0].mxu0
        %528 = vdwg.mxu0
        %v530 = vrot.slane %v526, 6
        %v532 = vadd.f32 %v241, %v530
        %v533 = vxor.u32 %v532, 2147483648
        %v534 = vmul.f32 %v533, 1.442695
        %v535 = vpow.pop %v534
        %v536 = vadd.f32 %v535, 1.0
        %v537 = vrcp.pop %v536
        %v538 = vmul.f32 1.0, %v537
        %v539 = vtanh.pop %v532
        %v541 = vrot.slane %v446, 7
        %v543 = vmul.f32 %v538, %v541
        %545 = vrot.lane.b32.xlu0 %v539, 64
        %v546 = vpop.permute.xlu0 %545
        %v548 = vmul.f32 %v538, %v546
        %550 = vrot.lane.b32.xlu0 %v548, 32
        %v551 = vpop.permute.xlu0 %550
        %v553 = vadd.f32 %v543, %v551
        %v554 = vtanh.pop %v553
        %556 = vrot.lane.b32.xlu0 %v554, 64
        %v557 = vpop.permute.xlu0 %556
        %v559 = vmul.f32 %v538, %v557
        %v561 = vrot.slane %v559, 2
        %562 = vrot.lane.b32.xlu0 %v561, 32
        %v563 = vpop.permute.xlu0 %562
        %v564 = vsel %vm248, %v563, 0
        %566 = vmatprep.subr.mxu0 0.0
        %567 = vmatpush1.msra.mxu0 %v244
        %568 = vmatprep.subr.mxu0 0.0
        %569 = vmatpush1.msra.mxu0 %v245
        %570 = vmatprep.subr.mxu0 0.0
        %571 = vmatpush1.msra.mxu0 %v246
        %572 = vmatprep.subr.mxu0 0.0
        %573 = vmatpush1.msra.mxu0 %v247
        %574 = vmatprep.subr.mxu0 0.0
        %575 = vmatpush1.msra.mxu0 0.0
        %576 = vmatprep.subr.mxu0 0.0
        %577 = vmatpush1.msra.mxu0 0.0
        %578 = vmatprep.subr.mxu0 0.0
        %579 = vmatpush1.msra.mxu0 0.0
        %580 = vmatprep.subr.mxu0 0.0
        %581 = vmatpush1.msra.mxu0 0.0
        %582 = vmatprep.subr.mxu0 0.0
        %583 = vmatpush1.msra.mxu0 0.0
        %584 = vmatprep.subr.mxu0 0.0
        %585 = vmatpush1.msra.mxu0 0.0
        %586 = vmatprep.subr.mxu0 0.0
        %587 = vmatpush1.msra.mxu0 0.0
        %588 = vmatprep.subr.mxu0 0.0
        %589 = vmatpush1.msra.mxu0 0.0
        %590 = vmatprep.subr.mxu0 0.0
        %591 = vmatpush1.msra.mxu0 0.0
        %592 = vmatprep.subr.mxu0 0.0
        %593 = vmatpush1.msra.mxu0 0.0
        %594 = vmatprep.subr.mxu0 0.0
        %595 = vmatpush1.msra.mxu0 0.0
        %596 = vmatprep.subr.mxu0 0.0
        %597 = vmatpush1.msra.mxu0 0.0
        %598 = vmatprep.subr.mxu0 0.0
        %599 = vmatpush1.msra.mxu0 0.0
        %600 = vmatprep.subr.mxu0 0.0
        %601 = vmatpush1.msra.mxu0 0.0
        %602 = vmatprep.subr.mxu0 0.0
        %603 = vmatpush1.msra.mxu0 0.0
        %604 = vmatprep.subr.mxu0 0.0
        %605 = vmatpush1.msra.mxu0 0.0
        %606 = vmatprep.subr.mxu0 0.0
        %607 = vmatpush1.msra.mxu0 0.0
        %608 = vmatprep.subr.mxu0 0.0
        %609 = vmatpush1.msra.mxu0 0.0
        %610 = vmatprep.subr.mxu0 0.0
        %611 = vmatpush1.msra.mxu0 0.0
        %612 = vmatprep.subr.mxu0 0.0
        %613 = vmatpush1.msra.mxu0 0.0
        %614 = vmatprep.subr.mxu0 0.0
        %615 = vmatpush1.msra.mxu0 0.0
        %616 = vmatprep.subr.mxu0 0.0
        %617 = vmatpush1.msra.mxu0 0.0
        %618 = vmatprep.subr.mxu0 0.0
        %619 = vmatpush1.msra.mxu0 0.0
        %620 = vmatprep.subr.mxu0 0.0
        %621 = vmatpush1.msra.mxu0 0.0
        %622 = vmatprep.subr.mxu0 0.0
        %623 = vmatpush1.msra.mxu0 0.0
        %624 = vmatprep.subr.mxu0 0.0
        %625 = vmatpush1.msra.mxu0 0.0
        %626 = vmatprep.subr.mxu0 0.0
        %627 = vmatpush1.msra.mxu0 0.0
        %628 = vmatprep.subr.mxu0 0.0
        %629 = vmatpush1.msra.mxu0 0.0
        %630 = vmatprep.mubr.f32.mxu0 0.0
        %631 = vmatmul.mubr.f32.gmra.mrb[0].mxu0 %v564
        %v632 = vpop.f32.mrb[0].mxu0
        %v633 = vadd.f32 0.0, %v632
        %v634 = vpop.f32.mrb[0].mxu0
        %635 = vdwg.mxu0
        %v637 = vrot.slane %v633, 5
        %v639 = vadd.f32 %v241, %v637
        %v640 = vxor.u32 %v639, 2147483648
        %v641 = vmul.f32 %v640, 1.442695
        %v642 = vpow.pop %v641
        %v643 = vadd.f32 %v642, 1.0
        %v644 = vrcp.pop %v643
        %v645 = vmul.f32 1.0, %v644
        %v646 = vtanh.pop %v639
        %v648 = vrot.slane %v553, 7
        %v650 = vmul.f32 %v645, %v648
        %652 = vrot.lane.b32.xlu0 %v646, 64
        %v653 = vpop.permute.xlu0 %652
        %v655 = vmul.f32 %v645, %v653
        %657 = vrot.lane.b32.xlu0 %v655, 32
        %v658 = vpop.permute.xlu0 %657
        %v660 = vadd.f32 %v650, %v658
        %v661 = vtanh.pop %v660
        %663 = vrot.lane.b32.xlu0 %v661, 64
        %v664 = vpop.permute.xlu0 %663
        %v666 = vmul.f32 %v645, %v664
        %v668 = vrot.slane %v666, 3
        %669 = vrot.lane.b32.xlu0 %v668, 32
        %v670 = vpop.permute.xlu0 %669
        %v671 = vsel %vm248, %v670, 0
        %673 = vmatprep.subr.mxu0 0.0
        %674 = vmatpush1.msra.mxu0 %v244
        %675 = vmatprep.subr.mxu0 0.0
        %676 = vmatpush1.msra.mxu0 %v245
        %677 = vmatprep.subr.mxu0 0.0
        %678 = vmatpush1.msra.mxu0 %v246
        %679 = vmatprep.subr.mxu0 0.0
        %680 = vmatpush1.msra.mxu0 %v247
        %681 = vmatprep.subr.mxu0 0.0
        %682 = vmatpush1.msra.mxu0 0.0
        %683 = vmatprep.subr.mxu0 0.0
        %684 = vmatpush1.msra.mxu0 0.0
        %685 = vmatprep.subr.mxu0 0.0
        %686 = vmatpush1.msra.mxu0 0.0
        %687 = vmatprep.subr.mxu0 0.0
        %688 = vmatpush1.msra.mxu0 0.0
        %689 = vmatprep.subr.mxu0 0.0
        %690 = vmatpush1.msra.mxu0 0.0
        %691 = vmatprep.subr.mxu0 0.0
        %692 = vmatpush1.msra.mxu0 0.0
        %693 = vmatprep.subr.mxu0 0.0
        %694 = vmatpush1.msra.mxu0 0.0
        %695 = vmatprep.subr.mxu0 0.0
        %696 = vmatpush1.msra.mxu0 0.0
        %697 = vmatprep.subr.mxu0 0.0
        %698 = vmatpush1.msra.mxu0 0.0
        %699 = vmatprep.subr.mxu0 0.0
        %700 = vmatpush1.msra.mxu0 0.0
        %701 = vmatprep.subr.mxu0 0.0
        %702 = vmatpush1.msra.mxu0 0.0
        %703 = vmatprep.subr.mxu0 0.0
        %704 = vmatpush1.msra.mxu0 0.0
        %705 = vmatprep.subr.mxu0 0.0
        %706 = vmatpush1.msra.mxu0 0.0
        %707 = vmatprep.subr.mxu0 0.0
        %708 = vmatpush1.msra.mxu0 0.0
        %709 = vmatprep.subr.mxu0 0.0
        %710 = vmatpush1.msra.mxu0 0.0
        %711 = vmatprep.subr.mxu0 0.0
        %712 = vmatpush1.msra.mxu0 0.0
        %713 = vmatprep.subr.mxu0 0.0
        %714 = vmatpush1.msra.mxu0 0.0
        %715 = vmatprep.subr.mxu0 0.0
        %716 = vmatpush1.msra.mxu0 0.0
        %717 = vmatprep.subr.mxu0 0.0
        %718 = vmatpush1.msra.mxu0 0.0
        %719 = vmatprep.subr.mxu0 0.0
        %720 = vmatpush1.msra.mxu0 0.0
        %721 = vmatprep.subr.mxu0 0.0
        %722 = vmatpush1.msra.mxu0 0.0
        %723 = vmatprep.subr.mxu0 0.0
        %724 = vmatpush1.msra.mxu0 0.0
        %725 = vmatprep.subr.mxu0 0.0
        %726 = vmatpush1.msra.mxu0 0.0
        %727 = vmatprep.subr.mxu0 0.0
        %728 = vmatpush1.msra.mxu0 0.0
        %729 = vmatprep.subr.mxu0 0.0
        %730 = vmatpush1.msra.mxu0 0.0
        %731 = vmatprep.subr.mxu0 0.0
        %732 = vmatpush1.msra.mxu0 0.0
        %733 = vmatprep.subr.mxu0 0.0
        %734 = vmatpush1.msra.mxu0 0.0
        %735 = vmatprep.subr.mxu0 0.0
        %736 = vmatpush1.msra.mxu0 0.0
        %737 = vmatprep.mubr.f32.mxu0 0.0
        %738 = vmatmul.mubr.f32.gmra.mrb[0].mxu0 %v671
        %v739 = vpop.f32.mrb[0].mxu0
        %v740 = vadd.f32 0.0, %v739
        %v741 = vpop.f32.mrb[0].mxu0
        %742 = vdwg.mxu0
        %v744 = vrot.slane %v740, 4
        %v746 = vadd.f32 %v241, %v744
        %v747 = vxor.u32 %v746, 2147483648
        %v748 = vmul.f32 %v747, 1.442695
        %v749 = vpow.pop %v748
        %v750 = vadd.f32 %v749, 1.0
        %v751 = vrcp.pop %v750
        %v752 = vmul.f32 1.0, %v751
        %v753 = vtanh.pop %v746
        %v755 = vrot.slane %v660, 7
        %v757 = vmul.f32 %v752, %v755
        %759 = vrot.lane.b32.xlu0 %v753, 64
        %v760 = vpop.permute.xlu0 %759
        %v762 = vmul.f32 %v752, %v760
        %764 = vrot.lane.b32.xlu0 %v762, 32
        %v765 = vpop.permute.xlu0 %764
        %v767 = vadd.f32 %v757, %v765
        %v768 = vtanh.pop %v767
        %770 = vrot.lane.b32.xlu0 %v768, 64
        %v771 = vpop.permute.xlu0 %770
        %v773 = vmul.f32 %v752, %v771
        %v775 = vrot.slane %v773, 4
        %776 = vrot.lane.b32.xlu0 %v775, 32
        %v777 = vpop.permute.xlu0 %776
        %v778 = vsel %vm248, %v777, 0
        %780 = vmatprep.subr.mxu0 0.0
        %781 = vmatpush1.msra.mxu0 %v244
        %782 = vmatprep.subr.mxu0 0.0
        %783 = vmatpush1.msra.mxu0 %v245
        %784 = vmatprep.subr.mxu0 0.0
        %785 = vmatpush1.msra.mxu0 %v246
        %786 = vmatprep.subr.mxu0 0.0
        %787 = vmatpush1.msra.mxu0 %v247
        %788 = vmatprep.subr.mxu0 0.0
        %789 = vmatpush1.msra.mxu0 0.0
        %790 = vmatprep.subr.mxu0 0.0
        %791 = vmatpush1.msra.mxu0 0.0
        %792 = vmatprep.subr.mxu0 0.0
        %793 = vmatpush1.msra.mxu0 0.0
        %794 = vmatprep.subr.mxu0 0.0
        %795 = vmatpush1.msra.mxu0 0.0
        %796 = vmatprep.subr.mxu0 0.0
        %797 = vmatpush1.msra.mxu0 0.0
        %798 = vmatprep.subr.mxu0 0.0
        %799 = vmatpush1.msra.mxu0 0.0
        %800 = vmatprep.subr.mxu0 0.0
        %801 = vmatpush1.msra.mxu0 0.0
        %802 = vmatprep.subr.mxu0 0.0
        %803 = vmatpush1.msra.mxu0 0.0
        %804 = vmatprep.subr.mxu0 0.0
        %805 = vmatpush1.msra.mxu0 0.0
        %806 = vmatprep.subr.mxu0 0.0
        %807 = vmatpush1.msra.mxu0 0.0
        %808 = vmatprep.subr.mxu0 0.0
        %809 = vmatpush1.msra.mxu0 0.0
        %810 = vmatprep.subr.mxu0 0.0
        %811 = vmatpush1.msra.mxu0 0.0
        %812 = vmatprep.subr.mxu0 0.0
        %813 = vmatpush1.msra.mxu0 0.0
        %814 = vmatprep.subr.mxu0 0.0
        %815 = vmatpush1.msra.mxu0 0.0
        %816 = vmatprep.subr.mxu0 0.0
        %817 = vmatpush1.msra.mxu0 0.0
        %818 = vmatprep.subr.mxu0 0.0
        %819 = vmatpush1.msra.mxu0 0.0
        %820 = vmatprep.subr.mxu0 0.0
        %821 = vmatpush1.msra.mxu0 0.0
        %822 = vmatprep.subr.mxu0 0.0
        %823 = vmatpush1.msra.mxu0 0.0
        %824 = vmatprep.subr.mxu0 0.0
        %825 = vmatpush1.msra.mxu0 0.0
        %826 = vmatprep.subr.mxu0 0.0
        %827 = vmatpush1.msra.mxu0 0.0
        %828 = vmatprep.subr.mxu0 0.0
        %829 = vmatpush1.msra.mxu0 0.0
        %830 = vmatprep.subr.mxu0 0.0
        %831 = vmatpush1.msra.mxu0 0.0
        %832 = vmatprep.subr.mxu0 0.0
        %833 = vmatpush1.msra.mxu0 0.0
        %834 = vmatprep.subr.mxu0 0.0
        %835 = vmatpush1.msra.mxu0 0.0
        %836 = vmatprep.subr.mxu0 0.0
        %837 = vmatpush1.msra.mxu0 0.0
        %838 = vmatprep.subr.mxu0 0.0
        %839 = vmatpush1.msra.mxu0 0.0
        %840 = vmatprep.subr.mxu0 0.0
        %841 = vmatpush1.msra.mxu0 0.0
        %842 = vmatprep.subr.mxu0 0.0
        %843 = vmatpush1.msra.mxu0 0.0
        %844 = vmatprep.mubr.f32.mxu0 0.0
        %845 = vmatmul.mubr.f32.gmra.mrb[0].mxu0 %v778
        %v846 = vpop.f32.mrb[0].mxu0
        %v847 = vadd.f32 0.0, %v846
        %v848 = vpop.f32.mrb[0].mxu0
        %849 = vdwg.mxu0
        %v851 = vrot.slane %v847, 3
        %v853 = vadd.f32 %v241, %v851
        %v854 = vxor.u32 %v853, 2147483648
        %v855 = vmul.f32 %v854, 1.442695
        %v856 = vpow.pop %v855
        %v857 = vadd.f32 %v856, 1.0
        %v858 = vrcp.pop %v857
        %v859 = vmul.f32 1.0, %v858
        %v860 = vtanh.pop %v853
        %v862 = vrot.slane %v767, 7
        %v864 = vmul.f32 %v859, %v862
        %866 = vrot.lane.b32.xlu0 %v860, 64
        %v867 = vpop.permute.xlu0 %866
        %v869 = vmul.f32 %v859, %v867
        %871 = vrot.lane.b32.xlu0 %v869, 32
        %v872 = vpop.permute.xlu0 %871
        %v874 = vadd.f32 %v864, %v872
        %v875 = vtanh.pop %v874
        %877 = vrot.lane.b32.xlu0 %v875, 64
        %v878 = vpop.permute.xlu0 %877
        %v880 = vmul.f32 %v859, %v878
        %v882 = vrot.slane %v880, 5
        %883 = vrot.lane.b32.xlu0 %v882, 32
        %v884 = vpop.permute.xlu0 %883
        %v885 = vsel %vm248, %v884, 0
        %887 = vmatprep.subr.mxu0 0.0
        %888 = vmatpush1.msra.mxu0 %v244
        %889 = vmatprep.subr.mxu0 0.0
        %890 = vmatpush1.msra.mxu0 %v245
        %891 = vmatprep.subr.mxu0 0.0
        %892 = vmatpush1.msra.mxu0 %v246
        %893 = vmatprep.subr.mxu0 0.0
        %894 = vmatpush1.msra.mxu0 %v247
        %895 = vmatprep.subr.mxu0 0.0
        %896 = vmatpush1.msra.mxu0 0.0
        %897 = vmatprep.subr.mxu0 0.0
        %898 = vmatpush1.msra.mxu0 0.0
        %899 = vmatprep.subr.mxu0 0.0
        %900 = vmatpush1.msra.mxu0 0.0
        %901 = vmatprep.subr.mxu0 0.0
        %902 = vmatpush1.msra.mxu0 0.0
        %903 = vmatprep.subr.mxu0 0.0
        %904 = vmatpush1.msra.mxu0 0.0
        %905 = vmatprep.subr.mxu0 0.0
        %906 = vmatpush1.msra.mxu0 0.0
        %907 = vmatprep.subr.mxu0 0.0
        %908 = vmatpush1.msra.mxu0 0.0
        %909 = vmatprep.subr.mxu0 0.0
        %910 = vmatpush1.msra.mxu0 0.0
        %911 = vmatprep.subr.mxu0 0.0
        %912 = vmatpush1.msra.mxu0 0.0
        %913 = vmatprep.subr.mxu0 0.0
        %914 = vmatpush1.msra.mxu0 0.0
        %915 = vmatprep.subr.mxu0 0.0
        %916 = vmatpush1.msra.mxu0 0.0
        %917 = vmatprep.subr.mxu0 0.0
        %918 = vmatpush1.msra.mxu0 0.0
        %919 = vmatprep.subr.mxu0 0.0
        %920 = vmatpush1.msra.mxu0 0.0
        %921 = vmatprep.subr.mxu0 0.0
        %922 = vmatpush1.msra.mxu0 0.0
        %923 = vmatprep.subr.mxu0 0.0
        %924 = vmatpush1.msra.mxu0 0.0
        %925 = vmatprep.subr.mxu0 0.0
        %926 = vmatpush1.msra.mxu0 0.0
        %927 = vmatprep.subr.mxu0 0.0
        %928 = vmatpush1.msra.mxu0 0.0
        %929 = vmatprep.subr.mxu0 0.0
        %930 = vmatpush1.msra.mxu0 0.0
        %931 = vmatprep.subr.mxu0 0.0
        %932 = vmatpush1.msra.mxu0 0.0
        %933 = vmatprep.subr.mxu0 0.0
        %934 = vmatpush1.msra.mxu0 0.0
        %935 = vmatprep.subr.mxu0 0.0
        %936 = vmatpush1.msra.mxu0 0.0
        %937 = vmatprep.subr.mxu0 0.0
        %938 = vmatpush1.msra.mxu0 0.0
        %939 = vmatprep.subr.mxu0 0.0
        %940 = vmatpush1.msra.mxu0 0.0
        %941 = vmatprep.subr.mxu0 0.0
        %942 = vmatpush1.msra.mxu0 0.0
        %943 = vmatprep.subr.mxu0 0.0
        %944 = vmatpush1.msra.mxu0 0.0
        %945 = vmatprep.subr.mxu0 0.0
        %946 = vmatpush1.msra.mxu0 0.0
        %947 = vmatprep.subr.mxu0 0.0
        %948 = vmatpush1.msra.mxu0 0.0
        %949 = vmatprep.subr.mxu0 0.0
        %950 = vmatpush1.msra.mxu0 0.0
        %951 = vmatprep.mubr.f32.mxu0 0.0
        %952 = vmatmul.mubr.f32.gmra.mrb[0].mxu0 %v885
        %v953 = vpop.f32.mrb[0].mxu0
        %v954 = vadd.f32 0.0, %v953
        %v955 = vpop.f32.mrb[0].mxu0
        %956 = vdwg.mxu0
        %v958 = vrot.slane %v954, 2
        %v960 = vadd.f32 %v241, %v958
        %v961 = vxor.u32 %v960, 2147483648
        %v962 = vmul.f32 %v961, 1.442695
        %v963 = vpow.pop %v962
        %v964 = vadd.f32 %v963, 1.0
        %v965 = vrcp.pop %v964
        %v966 = vmul.f32 1.0, %v965
        %v967 = vtanh.pop %v960
        %v969 = vrot.slane %v874, 7
        %v971 = vmul.f32 %v966, %v969
        %973 = vrot.lane.b32.xlu0 %v967, 64
        %v974 = vpop.permute.xlu0 %973
        %v976 = vmul.f32 %v966, %v974
        %978 = vrot.lane.b32.xlu0 %v976, 32
        %v979 = vpop.permute.xlu0 %978
        %v981 = vadd.f32 %v971, %v979
        %v982 = vtanh.pop %v981
        %984 = vrot.lane.b32.xlu0 %v982, 64
        %v985 = vpop.permute.xlu0 %984
        %v987 = vmul.f32 %v966, %v985
        %v989 = vrot.slane %v987, 6
        %990 = vrot.lane.b32.xlu0 %v989, 32
        %v991 = vpop.permute.xlu0 %990
        %v992 = vsel %vm248, %v991, 0
        %994 = vmatprep.subr.mxu0 0.0
        %995 = vmatpush1.msra.mxu0 %v244
        %996 = vmatprep.subr.mxu0 0.0
        %997 = vmatpush1.msra.mxu0 %v245
        %998 = vmatprep.subr.mxu0 0.0
        %999 = vmatpush1.msra.mxu0 %v246
        %1000 = vmatprep.subr.mxu0 0.0
        %1001 = vmatpush1.msra.mxu0 %v247
        %1002 = vmatprep.subr.mxu0 0.0
        %1003 = vmatpush1.msra.mxu0 0.0
        %1004 = vmatprep.subr.mxu0 0.0
        %1005 = vmatpush1.msra.mxu0 0.0
        %1006 = vmatprep.subr.mxu0 0.0
        %1007 = vmatpush1.msra.mxu0 0.0
        %1008 = vmatprep.subr.mxu0 0.0
        %1009 = vmatpush1.msra.mxu0 0.0
        %1010 = vmatprep.subr.mxu0 0.0
        %1011 = vmatpush1.msra.mxu0 0.0
        %1012 = vmatprep.subr.mxu0 0.0
        %1013 = vmatpush1.msra.mxu0 0.0
        %1014 = vmatprep.subr.mxu0 0.0
        %1015 = vmatpush1.msra.mxu0 0.0
        %1016 = vmatprep.subr.mxu0 0.0
        %1017 = vmatpush1.msra.mxu0 0.0
        %1018 = vmatprep.subr.mxu0 0.0
        %1019 = vmatpush1.msra.mxu0 0.0
        %1020 = vmatprep.subr.mxu0 0.0
        %1021 = vmatpush1.msra.mxu0 0.0
        %1022 = vmatprep.subr.mxu0 0.0
        %1023 = vmatpush1.msra.mxu0 0.0
        %1024 = vmatprep.subr.mxu0 0.0
        %1025 = vmatpush1.msra.mxu0 0.0
        %1026 = vmatprep.subr.mxu0 0.0
        %1027 = vmatpush1.msra.mxu0 0.0
        %1028 = vmatprep.subr.mxu0 0.0
        %1029 = vmatpush1.msra.mxu0 0.0
        %1030 = vmatprep.subr.mxu0 0.0
        %1031 = vmatpush1.msra.mxu0 0.0
        %1032 = vmatprep.subr.mxu0 0.0
        %1033 = vmatpush1.msra.mxu0 0.0
        %1034 = vmatprep.subr.mxu0 0.0
        %1035 = vmatpush1.msra.mxu0 0.0
        %1036 = vmatprep.subr.mxu0 0.0
        %1037 = vmatpush1.msra.mxu0 0.0
        %1038 = vmatprep.subr.mxu0 0.0
        %1039 = vmatpush1.msra.mxu0 0.0
        %1040 = vmatprep.subr.mxu0 0.0
        %1041 = vmatpush1.msra.mxu0 0.0
        %1042 = vmatprep.subr.mxu0 0.0
        %1043 = vmatpush1.msra.mxu0 0.0
        %1044 = vmatprep.subr.mxu0 0.0
        %1045 = vmatpush1.msra.mxu0 0.0
        %1046 = vmatprep.subr.mxu0 0.0
        %1047 = vmatpush1.msra.mxu0 0.0
        %1048 = vmatprep.subr.mxu0 0.0
        %1049 = vmatpush1.msra.mxu0 0.0
        %1050 = vmatprep.subr.mxu0 0.0
        %1051 = vmatpush1.msra.mxu0 0.0
        %1052 = vmatprep.subr.mxu0 0.0
        %1053 = vmatpush1.msra.mxu0 0.0
        %1054 = vmatprep.subr.mxu0 0.0
        %1055 = vmatpush1.msra.mxu0 0.0
        %1056 = vmatprep.subr.mxu0 0.0
        %1057 = vmatpush1.msra.mxu0 0.0
        %1058 = vmatprep.mubr.f32.mxu0 0.0
        %1059 = vmatmul.mubr.f32.gmra.mrb[0].mxu0 %v992
        %v1060 = vpop.f32.mrb[0].mxu0
        %v1061 = vadd.f32 0.0, %v1060
        %v1062 = vpop.f32.mrb[0].mxu0
        %1063 = vdwg.mxu0
        %v1065 = vrot.slane %v1061, 1
        %v1067 = vadd.f32 %v241, %v1065
        %v1068 = vxor.u32 %v1067, 2147483648
        %v1069 = vmul.f32 %v1068, 1.442695
        %v1070 = vpow.pop %v1069
        %v1071 = vadd.f32 %v1070, 1.0
        %v1072 = vrcp.pop %v1071
        %v1073 = vmul.f32 1.0, %v1072
        %v1074 = vtanh.pop %v1067
        %v1076 = vrot.slane %v981, 7
        %v1078 = vmul.f32 %v1073, %v1076
        %1080 = vrot.lane.b32.xlu0 %v1074, 64
        %v1081 = vpop.permute.xlu0 %1080
        %v1083 = vmul.f32 %v1073, %v1081
        %1085 = vrot.lane.b32.xlu0 %v1083, 32
        %v1086 = vpop.permute.xlu0 %1085
        %v1088 = vadd.f32 %v1078, %v1086
        %v1089 = vtanh.pop %v1088
        %1091 = vrot.lane.b32.xlu0 %v1089, 64
        %v1092 = vpop.permute.xlu0 %1091
        %v1094 = vmul.f32 %v1073, %v1092
        %vm1095 = vcmask 1040384
        %v1096 = vsel %vm1095, %v346, %v452
        %vm1097 = vcmask 1041408
        %v1098 = vsel %vm1097, %v1096, %v559
        %vm1099 = vcmask 1042432
        %v1100 = vsel %vm1099, %v1098, %v666
        %vm1101 = vcmask 1043456
        %v1102 = vsel %vm1101, %v1100, %v773
        %vm1103 = vcmask 1044480
        %v1104 = vsel %vm1103, %v1102, %v880
        %vm1105 = vcmask 1045504
        %v1106 = vsel %vm1105, %v1104, %v987
        %vm1107 = vcmask 1046528
        %v1108 = vsel %vm1107, %v1106, %v1094
        %v1109 = vld [vmem:[#allocation2 + $0x38] sm:$0xff]
        %v1110 = vld [vmem:[#allocation2 + $0x40] sm:$0xff]
        %v1111 = vld [vmem:[#allocation2 + $0x48] sm:$0xff]
        %v1112 = vld [vmem:[#allocation2 + $0x50] sm:$0xff]
        %v1113 = vld [vmem:[#allocation2 + $0x58] sm:$0x1]
        %v1114 = vlaneseq
        %v1115 = vshrl.u32 %v1114, 7
        %v1116 = vsub.s32 0, %v1115
        %v1117 = vrot.slane %v1113, %v1116
        %1119 = vrot.lane.b32.xlu0 %v1108, 32
        %v1120 = vpop.permute.xlu0 %1119
        %v1121 = vsel %vm248, %v1120, 0
        %1123 = vmatprep.subr.mxu0 0.0
        %1124 = vmatpush1.msra.mxu0 %v1109
        %1125 = vmatprep.subr.mxu0 0.0
        %1126 = vmatpush1.msra.mxu0 %v1110
        %1127 = vmatprep.subr.mxu0 0.0
        %1128 = vmatpush1.msra.mxu0 %v1111
        %1129 = vmatprep.subr.mxu0 0.0
        %1130 = vmatpush1.msra.mxu0 %v1112
        %1131 = vmatprep.subr.mxu0 0.0
        %1132 = vmatpush1.msra.mxu0 0.0
        %1133 = vmatprep.subr.mxu0 0.0
        %1134 = vmatpush1.msra.mxu0 0.0
        %1135 = vmatprep.subr.mxu0 0.0
        %1136 = vmatpush1.msra.mxu0 0.0
        %1137 = vmatprep.subr.mxu0 0.0
        %1138 = vmatpush1.msra.mxu0 0.0
        %1139 = vmatprep.subr.mxu0 0.0
        %1140 = vmatpush1.msra.mxu0 0.0
        %1141 = vmatprep.subr.mxu0 0.0
        %1142 = vmatpush1.msra.mxu0 0.0
        %1143 = vmatprep.subr.mxu0 0.0
        %1144 = vmatpush1.msra.mxu0 0.0
        %1145 = vmatprep.subr.mxu0 0.0
        %1146 = vmatpush1.msra.mxu0 0.0
        %1147 = vmatprep.subr.mxu0 0.0
        %1148 = vmatpush1.msra.mxu0 0.0
        %1149 = vmatprep.subr.mxu0 0.0
        %1150 = vmatpush1.msra.mxu0 0.0
        %1151 = vmatprep.subr.mxu0 0.0
        %1152 = vmatpush1.msra.mxu0 0.0
        %1153 = vmatprep.subr.mxu0 0.0
        %1154 = vmatpush1.msra.mxu0 0.0
        %1155 = vmatprep.subr.mxu0 0.0
        %1156 = vmatpush1.msra.mxu0 0.0
        %1157 = vmatprep.subr.mxu0 0.0
        %1158 = vmatpush1.msra.mxu0 0.0
        %1159 = vmatprep.subr.mxu0 0.0
        %1160 = vmatpush1.msra.mxu0 0.0
        %1161 = vmatprep.subr.mxu0 0.0
        %1162 = vmatpush1.msra.mxu0 0.0
        %1163 = vmatprep.subr.mxu0 0.0
        %1164 = vmatpush1.msra.mxu0 0.0
        %1165 = vmatprep.subr.mxu0 0.0
        %1166 = vmatpush1.msra.mxu0 0.0
        %1167 = vmatprep.subr.mxu0 0.0
        %1168 = vmatpush1.msra.mxu0 0.0
        %1169 = vmatprep.subr.mxu0 0.0
        %1170 = vmatpush1.msra.mxu0 0.0
        %1171 = vmatprep.subr.mxu0 0.0
        %1172 = vmatpush1.msra.mxu0 0.0
        %1173 = vmatprep.subr.mxu0 0.0
        %1174 = vmatpush1.msra.mxu0 0.0
        %1175 = vmatprep.subr.mxu0 0.0
        %1176 = vmatpush1.msra.mxu0 0.0
        %1177 = vmatprep.subr.mxu0 0.0
        %1178 = vmatpush1.msra.mxu0 0.0
        %1179 = vmatprep.subr.mxu0 0.0
        %1180 = vmatpush1.msra.mxu0 0.0
        %1181 = vmatprep.subr.mxu0 0.0
        %1182 = vmatpush1.msra.mxu0 0.0
        %1183 = vmatprep.subr.mxu0 0.0
        %1184 = vmatpush1.msra.mxu0 0.0
        %1185 = vmatprep.subr.mxu0 0.0
        %1186 = vmatpush1.msra.mxu0 0.0
        %1187 = vmatprep.mubr.f32.mxu0 0.0
        %1188 = vmatmul.mubr.f32.gmra.mrb[0].mxu0 %v1121
        %v1189 = vpop.f32.mrb[0].mxu0
        %v1190 = vadd.f32 %v1117, %v1189
        %v1191 = vpop.f32.mrb[0].mxu0
        %1192 = vdwg.mxu0
        %vm1193 = vcmask 64512
        %v1194 = vsel %vm1193, %v1190, -inf
        %1195 = vmax.xlane.f32.xlu0 %v1194
        %v1196 = vpop.xlane.xlu0 %1195
        %v1197 = vsub.f32 %v1190, %v1196
        %v1198 = vmul.f32 %v1197, 1.442695
        %v1199 = vpow.pop %v1198
        %v1200 = vsel %vm1193, %v1199, 0.0
        %1201 = vadd.xlane.f32.xlu0 %v1200
        %v1202 = vpop.xlane.xlu0 %1201
        %v1203 = vlog2.pop %v1202
        %v1204 = vmul.f32 %v1203, 0.6931472
        %v1205 = vsub.f32 %v1197, %v1204
        %1206 = vst.msk [vmem:[%s149] sm:$0xff] %vm1193, %v1205
        %s1207 = sand.u32 %s72, 1
        %s1208 = scalar_lea.sflag [#allocation4], %s1207
        %s1209 = sand.u32 %s72, 1
        %s1210 = smul.addr %s1209, 8
        %s1211 = scalar_lea.vmem [#allocation5], %s1210
        // Predicated region
        $region33: #{tpu_custom_call.1} parent=27 // pred_check
          %p1212 = pneg %p82
        $region34: #{tpu_custom_call.1} parent=27 // pred_check_branch
          %1214 = sbr.rel (%p1212) target = $region36
        $region35: #{tpu_custom_call.1} parent=27 // pred_region
          %s1216 = ssub.s32 128, 128
          %1217 = vsyncadd %s1208, %s1216
          %s1218 = smul.addr %s17, 128
          %s1219 = scalar_lea.hbm %s2, %s1218
          %s1221 = sshll.u32 %s1211, 4
          %s1222 = int_to_ptr.vmem [resolvable:$true] %s1221
          %1224 = dma.vmem_to_hbm [thread:$0]  %s1222, 128, %s1219, %s1208
        $region36: #{tpu_custom_call.1} parent=27 // pred_fallthru
          _
      $region28: #{tpu_custom_call.1} parent=5 // pred_fallthru
        _
      %p1225 = scmp.le.s32.totalorder 2, %s12
      // Predicated region
      $region37: #{tpu_custom_call.1} parent=5 // pred_check
        %p1226 = pneg %p1225
      $region38: #{tpu_custom_call.1} parent=5 // pred_check_branch
        %1228 = sbr.rel (%p1226) target = $region40
      $region39: #{tpu_custom_call.1} parent=5 // pred_region
        %s1229 = ssub.s32 %s12, 2
        // Predicated region
        $region41: #{tpu_custom_call.1} parent=39 // pred_check
          %p1230 = pneg %p88
        $region42: #{tpu_custom_call.1} parent=39 // pred_check_branch
          %1232 = sbr.rel (%p1230) target = $region44
        $region43: #{tpu_custom_call.1} parent=39 // pred_region
          %s1233 = sand.u32 %s73, 1
          %s1234 = scalar_lea.sflag [#allocation4], %s1233
          %s1235 = sand.u32 %s73, 1
          %s1236 = smul.addr %s1235, 8
          %s1237 = scalar_lea.vmem [#allocation5], %s1236
          %1238 = dma.done %s1234, 128
        $region44: #{tpu_custom_call.1} parent=39 // pred_fallthru
          _
      $region40: #{tpu_custom_call.1} parent=5 // pred_fallthru
        _
    $region6: #{tpu_custom_call.1} parent=1 // loop_footer
      %s16 = sadd.s32 1, %s12
    $region7: #{tpu_custom_call.1} parent=1 // loop_footer_branch
      %11 = sbr.rel target = $region3
    $region8: #{tpu_custom_call.1} parent=1 // loop_exit
      _
    %1239 = vsyncpa [#allocation3], 1
    %s1240 = scalar_lea.sflag [#allocation3], 1
    %1241 = vsyncpa %s1240, 1
    %1242 = vsyncpa [#allocation4], 1
    %s1243 = scalar_lea.sflag [#allocation4], 1
    %1244 = vsyncpa %s1243, 1

</llo_original>
